<compile_context>
chip_gen: v7x
topology: tpu7x:2x2x1
jax: 0.10.0
libtpu: 0.0.40
codegen_flags: <defaults>
</compile_context>

<pallas_src>
import jax
import jax.numpy as jnp
from jax.experimental import pallas as pl

# --------------------------- small, self-consistent config ---------------------
B = 2              # batch
N_VARS = 7         # Normalize(7, affine=False) -> 7 variables
SEQ_LEN = 16
PRED_LEN = 4
PATCH_LEN = 4
STRIDE = 2
D_MODEL = 32       # PatchEmbedding(32, patch_len, stride, 0.1)
N_HEADS = 4
D_FF = 16          # d_keys in ReprogrammingLayer(32, n_heads, d_ff, d_llm)
D_LLM = 64
VOCAB = 256        # synthetic LLM vocab
NUM_TOKENS = 32    # MappingLayer(vocab -> num_tokens)
PROMPT_LEN = 8
NUM_PATCHES = (SEQ_LEN + STRIDE - PATCH_LEN) // STRIDE + 1   # = 8
BN = B * N_VARS                                              # = 14
DK = D_FF * N_HEADS                                          # = 64
GROUPS = NUM_PATCHES * N_HEADS                               # = 32 softmax groups
WIDE = GROUPS * NUM_TOKENS                                   # = 1024 fused score lanes
EPS = 1e-5


# ------------------------------- fused Pallas kernel ---------------------------
def _timellm_fused_kernel(
    x_ref,        # (BN, SEQ_LEN)        f32  raw series, time on lanes
    w_xqk_ref,    # (SEQ_LEN, WIDE)      bf16 patch-embed ∘ Q-proj ∘ scale·Kᵀ, lane order (p, h, s)
    b_qk_ref,     # (1, WIDE)            f32  bq ∘ scale·Kᵀ, tiled over patches
    c_seg_ref,    # (WIDE, GROUPS)       bf16 0/1 segment-sum collector (32-lane blocks)
    b_seg_ref,    # (GROUPS, WIDE)       bf16 0/1 segment broadcast-back
    w_fin_ref,    # (WIDE, PRED_LEN)     bf16 V ∘ wo ∘ backbone stand-in ∘ FlattenHead
    b_fin_ref,    # (1, PRED_LEN)        f32  folded biases (bo, b_bb, b_head)
    out_ref,      # (BN, PRED_LEN)       f32
):
    # ---- RevIN 'norm': per-series stats over time (lane reduction), biased var
    x = x_ref[...]
    mean = jnp.mean(x, axis=-1, keepdims=True)                       # (BN, 1)
    var = jnp.mean((x - mean) ** 2, axis=-1, keepdims=True)          # unbiased=False
    std = jnp.sqrt(var + EPS)
    xn = ((x - mean) / std).astype(jnp.bfloat16)                     # (BN, T) bf16 operand

    # ---- attention scores for every (patch, head, source-token) in ONE matmul.
    #      Pack-time fold: pad+unfold+circular-conv, Q projection and scale·Kᵀ.
    scores = jnp.dot(xn, w_xqk_ref[...],
                     preferred_element_type=jnp.float32) + b_qk_ref[...]   # (BN, 1024)

    # ---- per-(patch, head) softmax over the 32 source tokens.
    #      A single per-row max is a valid shift for every 32-lane group
    #      (softmax is invariant to a per-row constant shift).
    m = jnp.max(scores, axis=-1, keepdims=True)
    pexp = jnp.exp(scores - m)                                        # f32 (EUP)
    den_g = jnp.dot(pexp.astype(jnp.bfloat16), c_seg_ref[...],
                    preferred_element_type=jnp.float32)               # (BN, 32) group sums
    den = jnp.dot(den_g.astype(jnp.bfloat16), b_seg_ref[...],
                  preferred_element_type=jnp.float32)                 # (BN, 1024) broadcast back
    attn = pexp * pl.reciprocal(den, approx=True)                     # f32 softmax weights

    # ---- attention-weighted values, out-projection, backbone stand-in and
    #      FlattenHead collapsed into one folded (WIDE, PRED_LEN) matmul.
    out_lin = jnp.dot(attn.astype(jnp.bfloat16), w_fin_ref[...],
                      preferred_element_type=jnp.float32) + b_fin_ref[...]   # (BN, 4)

    # ---- RevIN 'denorm' epilogue
    out_ref[...] = out_lin * std + mean


# ------------------------------- parameter init --------------------------------
def init_params(key):
    ks = jax.random.split(key, 17)
    s = 0.05
    p = {}
    # TokenEmbedding: Conv1d(patch_len -> d_model, kernel=3, circular, bias=False)
    p["conv_w"] = s * jax.random.normal(ks[0], (D_MODEL, PATCH_LEN, 3), jnp.float32)
    # ReprogrammingLayer(d_model=32, n_heads, d_keys=d_ff, d_llm)
    p["wq"] = s * jax.random.normal(ks[1], (D_MODEL, DK), jnp.float32)
    p["bq"] = 0.02 * jax.random.normal(ks[2], (DK,), jnp.float32)
    p["wk"] = s * jax.random.normal(ks[3], (D_LLM, DK), jnp.float32)
    p["bk"] = 0.02 * jax.random.normal(ks[4], (DK,), jnp.float32)
    p["wv"] = s * jax.random.normal(ks[5], (D_LLM, DK), jnp.float32)
    p["bv"] = 0.02 * jax.random.normal(ks[6], (DK,), jnp.float32)
    p["wo"] = s * jax.random.normal(ks[7], (DK, D_LLM), jnp.float32)
    p["bo"] = 0.02 * jax.random.normal(ks[8], (D_LLM,), jnp.float32)
    # Frozen LLM word embeddings + MappingLayer: Linear(vocab -> num_tokens)
    p["word_emb"] = s * jax.random.normal(ks[9], (VOCAB, D_LLM), jnp.float32)
    p["w_map"] = s * jax.random.normal(ks[10], (NUM_TOKENS, VOCAB), jnp.float32)
    p["b_map"] = 0.02 * jax.random.normal(ks[11], (NUM_TOKENS,), jnp.float32)
    # TODO(synk): prompt text generation + tokenizer + frozen Llama embedding
    # lookup have no Pallas equivalent; kept only as a deterministic placeholder
    # (the per-token backbone stand-in + FlattenHead's last-NUM_PATCHES slice
    # make the prompt branch contribute nothing — see kernel/backbone TODO).
    p["prompt_emb"] = s * jax.random.normal(ks[12], (BN, PROMPT_LEN, D_LLM), jnp.float32)
    # TODO(synk): the Llama decoder backbone is not implemented; a deterministic
    # per-token dense layer (d_llm -> d_llm) stands in so the data flow matches.
    p["w_bb"] = s * jax.random.normal(ks[13], (D_LLM, D_LLM), jnp.float32)
    p["b_bb"] = 0.02 * jax.random.normal(ks[14], (D_LLM,), jnp.float32)
    # FlattenHead: Linear(d_ff * patch_nums -> pred_len)
    nf = D_FF * NUM_PATCHES
    p["w_head"] = s * jax.random.normal(ks[15], (nf, PRED_LEN), jnp.float32)
    p["b_head"] = 0.02 * jax.random.normal(ks[16], (PRED_LEN,), jnp.float32)
    return p


def build_patch_weight(conv_w):
    """Fold ReplicationPad1d((0, stride)) + unfold(patch_len, stride) + the
    circular Conv1d of TokenEmbedding into one (SEQ_LEN, P*D_MODEL) matrix so
    that emb_wide = x_norm @ W (pad replication folded into the last column)."""
    w = jnp.zeros((SEQ_LEN + STRIDE, NUM_PATCHES * D_MODEL), jnp.float32)
    for p_idx in range(NUM_PATCHES):
        for j in range(3):                              # conv tap j -> source patch p+j-1 (circular)
            q = (p_idx + j - 1) % NUM_PATCHES
            for k in range(PATCH_LEN):
                c = q * STRIDE + k                      # column in the padded series
                w = w.at[c, p_idx * D_MODEL:(p_idx + 1) * D_MODEL].add(conv_w[:, k, j])
    # padded columns SEQ_LEN..SEQ_LEN+STRIDE-1 replicate column SEQ_LEN-1
    w_eff = w[:SEQ_LEN].at[SEQ_LEN - 1].add(jnp.sum(w[SEQ_LEN:], axis=0))
    return w_eff                                        # (SEQ_LEN, P*D_MODEL)


def prepare_inference_params(p):
    """One-time, exact, weight-only folding of every linear stage (f32 math,
    bf16 casts only on the final matmul operands)."""
    scale = 1.0 / (float(D_FF) ** 0.5)

    # 1) pad + unfold + circular conv -> (SEQ_LEN, P*D_MODEL)
    w_patch = build_patch_weight(p["conv_w"])
    wp3 = w_patch.reshape(SEQ_LEN, NUM_PATCHES, D_MODEL)                       # t p d

    # 2) source embeddings + K/V projections (hoisted out of the kernel)
    src = p["w_map"] @ p["word_emb"] + p["b_map"][:, None]                     # (32, 64)
    k = src @ p["wk"] + p["bk"]                                                # (32, 64)
    v = src @ p["wv"] + p["bv"]                                                # (32, 64)
    k3 = k.reshape(NUM_TOKENS, N_HEADS, D_FF)                                  # s h e
    v3 = v.reshape(NUM_TOKENS, N_HEADS, D_FF)
    wq3 = p["wq"].reshape(D_MODEL, N_HEADS, D_FF)                              # d h e
    bq2 = p["bq"].reshape(N_HEADS, D_FF)                                       # h e

    # 3) patch-embed ∘ Q-projection ∘ scale·Kᵀ -> score weight, lane order (p, h, s)
    w_xqk = scale * jnp.einsum("tpd,dhe,she->tphs", wp3, wq3, k3)
    w_xqk = w_xqk.reshape(SEQ_LEN, WIDE)                                       # (16, 1024)
    b_hs = scale * jnp.einsum("he,she->hs", bq2, k3)                           # (4, 32)
    b_qk = jnp.tile(b_hs.reshape(1, N_HEADS * NUM_TOKENS), (1, NUM_PATCHES))   # (1, 1024)

    # 4) per-(patch, head) softmax segment sums as two 0/1 matmuls
    c_seg = jnp.kron(jnp.eye(GROUPS, dtype=jnp.float32),
                     jnp.ones((NUM_TOKENS, 1), jnp.float32))                   # (1024, 32)
    b_seg = jnp.kron(jnp.eye(GROUPS, dtype=jnp.float32),
                     jnp.ones((1, NUM_TOKENS), jnp.float32))                   # (32, 1024)

    # 5) V ∘ attention out-projection ∘ backbone stand-in (cols :d_ff) ∘ FlattenHead
    w_bb = p["w_bb"][:, :D_FF]                                                 # (64, 16)
    b_bb = p["b_bb"][:D_FF]
    wo3 = p["wo"].reshape(N_HEADS, D_FF, D_LLM)                                # h e m
    wob = jnp.einsum("hem,mf->hef", wo3, w_bb)                                 # (4, 16, 16)
    vob = jnp.einsum("she,hef->shf", v3, wob)                                  # (32, 4, 16)
    wh3 = p["w_head"].reshape(D_FF, NUM_PATCHES, PRED_LEN)                     # f p o (flat idx f*P+p)
    w_fin = jnp.einsum("shf,fpo->phso", vob, wh3).reshape(WIDE, PRED_LEN)      # (1024, 4)
    bias_tok = p["bo"] @ w_bb + b_bb                                           # (16,)
    b_fin = (p["b_head"] + jnp.einsum("f,fpo->o", bias_tok, wh3))[None, :]     # (1, 4)

    return {
        "w_xqk": w_xqk.astype(jnp.bfloat16),
        "b_qk": b_qk.astype(jnp.float32),
        "c_seg": c_seg.astype(jnp.bfloat16),
        "b_seg": b_seg.astype(jnp.bfloat16),
        "w_fin": w_fin.astype(jnp.bfloat16),
        "b_fin": b_fin.astype(jnp.float32),
    }


# ------------------------------- pure-JAX reference -----------------------------
def reference_forward(x_enc, p):
    """Unfolded reference of the forward (per-token backbone stand-in)."""
    x = x_enc.astype(jnp.float32)                                              # (B, T, N)
    mean = jnp.mean(x, axis=1, keepdims=True)
    var = jnp.mean((x - mean) ** 2, axis=1, keepdims=True)
    std = jnp.sqrt(var + EPS)
    xn = (x - mean) / std
    # PatchEmbedding: (B,T,N) -> (B*N, T) -> ReplicationPad1d((0, stride)) -> unfold
    xs = jnp.transpose(xn, (0, 2, 1)).reshape(BN, SEQ_LEN)
    xp = jnp.concatenate([xs, jnp.repeat(xs[:, -1:], STRIDE, axis=1)], axis=1)
    patches = jnp.stack([xp[:, i * STRIDE:i * STRIDE + PATCH_LEN]
                         for i in range(NUM_PATCHES)], axis=1)                 # (BN, P, patch_len)
    # TokenEmbedding: circular Conv1d over the patch axis (channels = patch_len)
    h = jnp.transpose(patches, (0, 2, 1))                                      # (BN, c, P)
    hp = jnp.concatenate([h[:, :, -1:], h, h[:, :, :1]], axis=2)               # circular pad 1|1
    win = jnp.stack([hp[:, :, j:j + NUM_PATCHES] for j in range(3)], axis=3)   # (BN, c, P, 3)
    emb = jnp.einsum("bcpj,dcj->bpd", win, p["conv_w"])                        # (BN, P, D_MODEL)
    # MappingLayer source embeddings
    src = p["w_map"] @ p["word_emb"] + p["b_map"][:, None]                     # (32, 64)
    # ReprogrammingLayer
    q = emb.reshape(BN * NUM_PATCHES, D_MODEL) @ p["wq"] + p["bq"]
    k = src @ p["wk"] + p["bk"]
    v = src @ p["wv"] + p["bv"]
    q4 = q.reshape(-1, N_HEADS, D_FF)
    k4 = k.reshape(NUM_TOKENS, N_HEADS, D_FF)
    v4 = v.reshape(NUM_TOKENS, N_HEADS, D_FF)
    scores = jnp.einsum("lhe,she->lhs", q4, k4) / jnp.sqrt(float(D_FF))
    attn = jax.nn.softmax(scores, axis=-1)
    ctx = jnp.einsum("lhs,she->lhe", attn, v4).reshape(-1, DK)
    enc = ctx @ p["wo"] + p["bo"]                                              # (BN*P, D_LLM)
    # Backbone stand-in (per-token dense) + dec_out[:, :, :d_ff]
    tok = enc @ p["w_bb"][:, :D_FF] + p["b_bb"][:D_FF]                         # (BN*P, D_FF)
    # FlattenHead over the last NUM_PATCHES tokens (prompt tokens discarded)
    tok3 = tok.reshape(BN, NUM_PATCHES, D_FF)
    flat = jnp.transpose(tok3, (0, 2, 1)).reshape(BN, D_FF * NUM_PATCHES)      # index f*P + p
    out_lin = flat @ p["w_head"] + p["b_head"]                                 # (BN, 4)
    out = (out_lin.reshape(B, N_VARS, PRED_LEN) * jnp.transpose(std, (0, 2, 1))
           + jnp.transpose(mean, (0, 2, 1)))
    return jnp.transpose(out, (0, 2, 1))                                       # (B, pred_len, N)


# ------------------------------- forward pass ----------------------------------
@jax.jit
def timellm_forward(x_enc, kp):
    # (B, T, N) -> (B*N, T): series rows, time on lanes (the transpose the
    # patch embedding needed anyway, applied once to the raw input).
    x2d = jnp.transpose(x_enc, (0, 2, 1)).reshape(BN, SEQ_LEN).astype(jnp.float32)
    out2d = pl.pallas_call(
        _timellm_fused_kernel,
        out_shape=jax.ShapeDtypeStruct((BN, PRED_LEN), jnp.float32),
    )(x2d, kp["w_xqk"], kp["b_qk"], kp["c_seg"], kp["b_seg"],
      kp["w_fin"], kp["b_fin"])
    # (B*N, pred_len) -> (B, pred_len, N)
    return out2d.reshape(B, N_VARS, PRED_LEN).transpose(0, 2, 1)


# ------------------------------------ main --------------------------------------
if __name__ == "__main__":
    key = jax.random.PRNGKey(0)
    k_x, k_p = jax.random.split(key)
    x_enc = jax.random.normal(k_x, (B, SEQ_LEN, N_VARS), jnp.float32)   # (2, 16, 7)
    params = init_params(k_p)
    kparams = prepare_inference_params(params)

    out = timellm_forward(x_enc, kparams)
    out = jax.block_until_ready(out)

    assert out.shape == (B, PRED_LEN, N_VARS), out.shape
    assert bool(jnp.all(jnp.isfinite(out)))

    # Validate the fused/folded kernel against the unfolded pure-JAX reference
    # (tolerance covers bf16 matmul operands + approximate reciprocal).
    ref = reference_forward(x_enc, params)
    max_err = float(jnp.max(jnp.abs(out - ref)))
    assert max_err < 1e-2, f"kernel vs reference mismatch: max abs err = {max_err}"

    print("KERNEL_OK")
</pallas_src>

<mosaic_0001>
module attributes {stable_mosaic.version = 11 : i64} {
  func.func @_timellm_fused_kernel(%arg0: memref<14x16xf32, #tpu.memory_space<vmem>>, %arg1: memref<16x1024xbf16, #tpu.memory_space<vmem>>, %arg2: memref<1x1024xf32, #tpu.memory_space<vmem>>, %arg3: memref<1024x32xbf16, #tpu.memory_space<vmem>>, %arg4: memref<32x1024xbf16, #tpu.memory_space<vmem>>, %arg5: memref<1024x4xbf16, #tpu.memory_space<vmem>>, %arg6: memref<1x4xf32, #tpu.memory_space<vmem>>, %arg7: memref<14x4xf32, #tpu.memory_space<vmem>>) attributes {dimension_semantics = [], scalar_prefetch = 0 : i64, scratch_operands = 0 : i64, tpu.core_type = #tpu.core_type<tc>} {
    %c0 = arith.constant 0 : index
    %c0_0 = arith.constant 0 : index
    %0 = vector.load %arg0[%c0, %c0_0] : memref<14x16xf32, #tpu.memory_space<vmem>>, vector<14x16xf32>
    %cst = arith.constant dense<0.000000e+00> : vector<14xf32>
    %1 = vector.multi_reduction <add>, %0, %cst [1] : vector<14x16xf32> to vector<14xf32>
    %2 = vector.shape_cast %1 : vector<14xf32> to vector<14x1xf32>
    %cst_1 = arith.constant 1.600000e+01 : f32
    %3 = vector.broadcast %cst_1 : f32 to vector<14x1xf32>
    %4 = arith.divf %2, %3 : vector<14x1xf32>
    %5 = vector.broadcast %4 : vector<14x1xf32> to vector<14x16xf32>
    %6 = arith.subf %0, %5 : vector<14x16xf32>
    %7 = arith.mulf %6, %6 : vector<14x16xf32>
    %cst_2 = arith.constant dense<0.000000e+00> : vector<14xf32>
    %8 = vector.multi_reduction <add>, %7, %cst_2 [1] : vector<14x16xf32> to vector<14xf32>
    %9 = vector.shape_cast %8 : vector<14xf32> to vector<14x1xf32>
    %cst_3 = arith.constant 1.600000e+01 : f32
    %10 = vector.broadcast %cst_3 : f32 to vector<14x1xf32>
    %11 = arith.divf %9, %10 : vector<14x1xf32>
    %cst_4 = arith.constant 9.99999974E-6 : f32
    %12 = vector.broadcast %cst_4 : f32 to vector<14x1xf32>
    %13 = arith.addf %11, %12 : vector<14x1xf32>
    %14 = math.sqrt %13 : vector<14x1xf32>
    %15 = vector.broadcast %4 : vector<14x1xf32> to vector<14x16xf32>
    %16 = arith.subf %0, %15 : vector<14x16xf32>
    %17 = vector.broadcast %14 : vector<14x1xf32> to vector<14x16xf32>
    %18 = arith.divf %16, %17 : vector<14x16xf32>
    %19 = arith.truncf %18 : vector<14x16xf32> to vector<14x16xbf16>
    %c0_5 = arith.constant 0 : index
    %c0_6 = arith.constant 0 : index
    %20 = vector.load %arg1[%c0_5, %c0_6] : memref<16x1024xbf16, #tpu.memory_space<vmem>>, vector<16x1024xbf16>
    %cst_7 = arith.constant dense<0.000000e+00> : vector<14x1024xf32>
    %21 = tpu.matmul %19, %20, %cst_7 {dimension_numbers = #tpu.dot_dimension_numbers<[1], [0], [0], [1], [0, 0, 1, 1], [], []>} : vector<14x16xbf16>, vector<16x1024xbf16>, vector<14x1024xf32> -> vector<14x1024xf32>
    %c0_8 = arith.constant 0 : index
    %c0_9 = arith.constant 0 : index
    %22 = vector.load %arg2[%c0_8, %c0_9] : memref<1x1024xf32, #tpu.memory_space<vmem>>, vector<1x1024xf32>
    %23 = vector.broadcast %22 : vector<1x1024xf32> to vector<14x1024xf32>
    %24 = arith.addf %21, %23 : vector<14x1024xf32>
    %cst_10 = arith.constant dense<0xFF800000> : vector<14xf32>
    %25 = vector.multi_reduction <maximumf>, %24, %cst_10 [1] : vector<14x1024xf32> to vector<14xf32>
    %26 = vector.shape_cast %25 : vector<14xf32> to vector<14x1xf32>
    %27 = vector.broadcast %26 : vector<14x1xf32> to vector<14x1024xf32>
    %28 = arith.subf %24, %27 : vector<14x1024xf32>
    %29 = math.exp %28 : vector<14x1024xf32>
    %30 = arith.truncf %29 : vector<14x1024xf32> to vector<14x1024xbf16>
    %c0_11 = arith.constant 0 : index
    %c0_12 = arith.constant 0 : index
    %31 = vector.load %arg3[%c0_11, %c0_12] : memref<1024x32xbf16, #tpu.memory_space<vmem>>, vector<1024x32xbf16>
    %cst_13 = arith.constant dense<0.000000e+00> : vector<14x32xf32>
    %32 = tpu.matmul %30, %31, %cst_13 {dimension_numbers = #tpu.dot_dimension_numbers<[1], [0], [0], [1], [0, 0, 1, 1], [], []>} : vector<14x1024xbf16>, vector<1024x32xbf16>, vector<14x32xf32> -> vector<14x32xf32>
    %33 = arith.truncf %32 : vector<14x32xf32> to vector<14x32xbf16>
    %c0_14 = arith.constant 0 : index
    %c0_15 = arith.constant 0 : index
    %34 = vector.load %arg4[%c0_14, %c0_15] : memref<32x1024xbf16, #tpu.memory_space<vmem>>, vector<32x1024xbf16>
    %cst_16 = arith.constant dense<0.000000e+00> : vector<14x1024xf32>
    %35 = tpu.matmul %33, %34, %cst_16 {dimension_numbers = #tpu.dot_dimension_numbers<[1], [0], [0], [1], [0, 0, 1, 1], [], []>} : vector<14x32xbf16>, vector<32x1024xbf16>, vector<14x1024xf32> -> vector<14x1024xf32>
    %36 = tpu.reciprocal %35 {approx = true} : vector<14x1024xf32> -> vector<14x1024xf32>
    %37 = arith.mulf %29, %36 : vector<14x1024xf32>
    %38 = arith.truncf %37 : vector<14x1024xf32> to vector<14x1024xbf16>
    %c0_17 = arith.constant 0 : index
    %c0_18 = arith.constant 0 : index
    %39 = vector.load %arg5[%c0_17, %c0_18] : memref<1024x4xbf16, #tpu.memory_space<vmem>>, vector<1024x4xbf16>
    %cst_19 = arith.constant dense<0.000000e+00> : vector<14x4xf32>
    %40 = tpu.matmul %38, %39, %cst_19 {dimension_numbers = #tpu.dot_dimension_numbers<[1], [0], [0], [1], [0, 0, 1, 1], [], []>} : vector<14x1024xbf16>, vector<1024x4xbf16>, vector<14x4xf32> -> vector<14x4xf32>
    %c0_20 = arith.constant 0 : index
    %c0_21 = arith.constant 0 : index
    %41 = vector.load %arg6[%c0_20, %c0_21] : memref<1x4xf32, #tpu.memory_space<vmem>>, vector<1x4xf32>
    %42 = vector.broadcast %41 : vector<1x4xf32> to vector<14x4xf32>
    %43 = arith.addf %40, %42 : vector<14x4xf32>
    %44 = vector.broadcast %14 : vector<14x1xf32> to vector<14x4xf32>
    %45 = arith.mulf %43, %44 : vector<14x4xf32>
    %46 = vector.broadcast %4 : vector<14x1xf32> to vector<14x4xf32>
    %47 = arith.addf %45, %46 : vector<14x4xf32>
    %c0_22 = arith.constant 0 : index
    %c0_23 = arith.constant 0 : index
    %48 = vector.load %arg7[%c0_22, %c0_23] : memref<14x4xf32, #tpu.memory_space<vmem>>, vector<14x4xf32>
    tpu.vector_store %arg7[%c0_22, %c0_23], %47 {strides = array<i32>} : memref<14x4xf32, #tpu.memory_space<vmem>>, vector<14x4xf32>,
    return
  }
}

</mosaic_0001>

<llo_original>
// kernel: timellm_forward.1
$region0: #{timellm_forward.1}
  #allocation0 [shape = 'u32[]', space=smem, size = 0x4, offset = 0x4, fixed_abs, tag = 'smem constant byte address 0x4 - core index']
  #allocation1 [shape = 'u32[144,128]{1,0:T(1,128)}', space=vmem, size = 0x12000, scoped, tag = 'internal scratch']
  %s0 = inlined_call_operand.vmem [shape: f32[14,16], index: 0, kind: input, shape index: {}]
  %s1 = inlined_call_operand.vmem [shape: bf16[16,1024], index: 1, kind: input, shape index: {}]
  %s2 = inlined_call_operand.vmem [shape: f32[1,1024], index: 2, kind: input, shape index: {}]
  %s3 = inlined_call_operand.vmem [shape: bf16[1024,32], index: 3, kind: input, shape index: {}]
  %s4 = inlined_call_operand.vmem [shape: bf16[32,1024], index: 4, kind: input, shape index: {}]
  %s5 = inlined_call_operand.vmem [shape: bf16[1024,4], index: 5, kind: input, shape index: {}]
  %s6 = inlined_call_operand.vmem [shape: f32[1,4], index: 6, kind: input, shape index: {}]
  %s7 = inlined_call_operand.vmem [shape: f32[14,4], index: 7, kind: output, shape index: {}]
  %s8 = sld [smem:[#allocation0]]
  $region38: #{timellm_forward.1} parent=0
    _
  %s10 = ssub.s32 1, %s8
  %s11 = scalar_select 0, %s10, %s8
  // Predicated region
  $region2: #{timellm_forward.1} parent=0 // pred_check
    _
  $region3: #{timellm_forward.1} parent=0 // pred_check_branch
    %13 = sbr.rel (0) target = $region5
  $region4: #{timellm_forward.1} parent=0 // pred_region
    _
  $region5: #{timellm_forward.1} parent=0 // pred_fallthru
    _
  // Predicated region
  $region6: #{timellm_forward.1} parent=0 // pred_check
    _
  $region7: #{timellm_forward.1} parent=0 // pred_check_branch
    %15 = sbr.rel (0) target = $region9
  $region8: #{timellm_forward.1} parent=0 // pred_region
    _
  $region9: #{timellm_forward.1} parent=0 // pred_fallthru
    _
  // Predicated region
  $region10: #{timellm_forward.1} parent=0 // pred_check
    _
  $region11: #{timellm_forward.1} parent=0 // pred_check_branch
    %17 = sbr.rel (0) target = $region13
  $region12: #{timellm_forward.1} parent=0 // pred_region
    _
  $region13: #{timellm_forward.1} parent=0 // pred_fallthru
    _
  // Predicated region
  $region14: #{timellm_forward.1} parent=0 // pred_check
    _
  $region15: #{timellm_forward.1} parent=0 // pred_check_branch
    %19 = sbr.rel (0) target = $region17
  $region16: #{timellm_forward.1} parent=0 // pred_region
    _
  $region17: #{timellm_forward.1} parent=0 // pred_fallthru
    _
  // Predicated region
  $region18: #{timellm_forward.1} parent=0 // pred_check
    _
  $region19: #{timellm_forward.1} parent=0 // pred_check_branch
    %21 = sbr.rel (0) target = $region21
  $region20: #{timellm_forward.1} parent=0 // pred_region
    _
  $region21: #{timellm_forward.1} parent=0 // pred_fallthru
    _
  // Predicated region
  $region22: #{timellm_forward.1} parent=0 // pred_check
    _
  $region23: #{timellm_forward.1} parent=0 // pred_check_branch
    %23 = sbr.rel (0) target = $region25
  $region24: #{timellm_forward.1} parent=0 // pred_region
    _
  $region25: #{timellm_forward.1} parent=0 // pred_fallthru
    _
  // Predicated region
  $region26: #{timellm_forward.1} parent=0 // pred_check
    _
  $region27: #{timellm_forward.1} parent=0 // pred_check_branch
    %25 = sbr.rel (0) target = $region29
  $region28: #{timellm_forward.1} parent=0 // pred_region
    _
  $region29: #{timellm_forward.1} parent=0 // pred_fallthru
    _
  %v27 = vld [vmem:[%s0] sm:$0xff]
  %v28 = vld [vmem:[%s0 + $0x8] sm:$0x3f]
  %vm29 = vcmask 130048
  %v30 = vsel %vm29, %v27, 0.0
  %31 = vadd.xlane.f32.xlu0 %v30
  %v32 = vpop.xlane.xlu0 %31
  %vm33 = vcmask 128000
  %v34 = vsel %vm33, %v28, 0.0
  %35 = vadd.xlane.f32.xlu0 %v34
  %v36 = vpop.xlane.xlu0 %35
  %v37 = vrcp.pop 16.0
  %v38 = vmul.f32 %v32, %v37
  %v39 = vmul.f32 %v36, %v37
  %v40 = vsub.f32 %v27, %v38
  %v41 = vsub.f32 %v28, %v39
  %v42 = vmul.f32 %v40, %v40
  %v43 = vmul.f32 %v41, %v41
  %v44 = vsel %vm29, %v42, 0.0
  %45 = vadd.xlane.f32.xlu0 %v44
  %v46 = vpop.xlane.xlu0 %45
  %v47 = vsel %vm33, %v43, 0.0
  %48 = vadd.xlane.f32.xlu0 %v47
  %v49 = vpop.xlane.xlu0 %48
  %v50 = vmul.f32 %v46, %v37
  %v51 = vmul.f32 %v49, %v37
  %v52 = vadd.f32 %v50, 1e-05
  %v53 = vadd.f32 %v51, 1e-05
  %v54 = vrsqrt.pop %v52
  %v55 = vmul.f32 %v52, %v54
  %vm56 = vcmp.eq.f32.partialorder %v52, inf
  %v57 = vsel %vm56, %v52, %v55
  %vm58 = vcmp.eq.f32.partialorder %v52, 0.0
  %v59 = vand.u32 %v52, 2147483648
  %v60 = vsel %vm58, %v59, %v57
  %v61 = vrsqrt.pop %v53
  %v62 = vmul.f32 %v53, %v61
  %vm63 = vcmp.eq.f32.partialorder %v53, inf
  %v64 = vsel %vm63, %v53, %v62
  %vm65 = vcmp.eq.f32.partialorder %v53, 0.0
  %v66 = vand.u32 %v53, 2147483648
  %v67 = vsel %vm65, %v66, %v64
  %v68 = vrcp.pop %v60
  %v69 = vmul.f32 %v40, %v68
  %v70 = vrcp.pop %v67
  %v71 = vmul.f32 %v41, %v70
  %v72 = vpack.c.bf16 %v71, %v69
  %v73 = vld [vmem:[%s1] sm:$0xff]
  %v74 = vld [vmem:[%s1 + $0x8] sm:$0xff]
  %v75 = vld [vmem:[%s1 + $0x10] sm:$0xff]
  %v76 = vld [vmem:[%s1 + $0x18] sm:$0xff]
  %v77 = vld [vmem:[%s1 + $0x20] sm:$0xff]
  %v78 = vld [vmem:[%s1 + $0x28] sm:$0xff]
  %v79 = vld [vmem:[%s1 + $0x30] sm:$0xff]
  %v80 = vld [vmem:[%s1 + $0x38] sm:$0xff]
  %v81 = vld [vmem:[%s2] sm:$0xff]
  %v83 = vlaneseq
  %v84 = vshrl.u32 %v83, 7
  %v85 = vsub.s32 0, %v84
  %v86 = vrot.slane %v81, %v85
  %v87 = vlaneseq
  %v88 = vshrl.u32 %v87, 7
  %v89 = vsub.s32 1, %v88
  %v90 = vrot.slane %v81, %v89
  %v91 = vlaneseq
  %v92 = vshrl.u32 %v91, 7
  %v93 = vsub.s32 2, %v92
  %v94 = vrot.slane %v81, %v93
  %v95 = vlaneseq
  %v96 = vshrl.u32 %v95, 7
  %v97 = vsub.s32 3, %v96
  %v98 = vrot.slane %v81, %v97
  %v99 = vlaneseq
  %v100 = vshrl.u32 %v99, 7
  %v101 = vsub.s32 4, %v100
  %v102 = vrot.slane %v81, %v101
  %v103 = vlaneseq
  %v104 = vshrl.u32 %v103, 7
  %v105 = vsub.s32 5, %v104
  %v106 = vrot.slane %v81, %v105
  %v107 = vlaneseq
  %v108 = vshrl.u32 %v107, 7
  %v109 = vsub.s32 6, %v108
  %v110 = vrot.slane %v81, %v109
  %v111 = vlaneseq
  %v112 = vshrl.u32 %v111, 7
  %v113 = vsub.s32 7, %v112
  %v114 = vrot.slane %v81, %v113
  %v131 = vunpack.c.l.b16 %v73
  %v132 = vunpack.c.h.b16 %v73
  %v133 = vunpack.c.l.b16 %v74
  %v134 = vunpack.c.h.b16 %v74
  %v135 = vunpack.c.l.b16 %v75
  %v136 = vunpack.c.h.b16 %v75
  %v137 = vunpack.c.l.b16 %v76
  %v138 = vunpack.c.h.b16 %v76
  %v139 = vunpack.c.l.b16 %v77
  %v140 = vunpack.c.h.b16 %v77
  %v141 = vunpack.c.l.b16 %v78
  %v142 = vunpack.c.h.b16 %v78
  %v143 = vunpack.c.l.b16 %v79
  %v144 = vunpack.c.h.b16 %v79
  %v145 = vunpack.c.l.b16 %v80
  %v146 = vunpack.c.h.b16 %v80
  %v147 = vpack.c.b16 %v139, %v131
  %v148 = vpack.c.b16 %v140, %v132
  %v149 = vpack.c.b16 %v141, %v133
  %v150 = vpack.c.b16 %v142, %v134
  %v151 = vpack.c.b16 %v143, %v135
  %v152 = vpack.c.b16 %v144, %v136
  %v153 = vpack.c.b16 %v145, %v137
  %v154 = vpack.c.b16 %v146, %v138
  %v164 = vsel %vm29, %v72, 0
  %166 = vmatprep.subr.bf16.mxu0 %v148
  %167 = vmatpush1.bf16.msra.mxu0 %v147
  %168 = vmatprep.subr.bf16.mxu0 0
  %169 = vmatpush1.bf16.msra.mxu0 0
  %170 = vmatprep.subr.bf16.mxu0 0
  %171 = vmatpush1.bf16.msra.mxu0 0
  %172 = vmatprep.subr.bf16.mxu0 0
  %173 = vmatpush1.bf16.msra.mxu0 0
  %174 = vmatprep.subr.bf16.mxu0 0
  %175 = vmatpush1.bf16.msra.mxu0 0
  %176 = vmatprep.subr.bf16.mxu0 0
  %177 = vmatpush1.bf16.msra.mxu0 0
  %178 = vmatprep.subr.bf16.mxu0 0
  %179 = vmatpush1.bf16.msra.mxu0 0
  %180 = vmatprep.subr.bf16.mxu0 0
  %181 = vmatpush1.bf16.msra.mxu0 0
  %182 = vmatprep.subr.bf16.mxu0 0
  %183 = vmatpush1.bf16.msra.mxu0 0
  %184 = vmatprep.subr.bf16.mxu0 0
  %185 = vmatpush1.bf16.msra.mxu0 0
  %186 = vmatprep.subr.bf16.mxu0 0
  %187 = vmatpush1.bf16.msra.mxu0 0
  %188 = vmatprep.subr.bf16.mxu0 0
  %189 = vmatpush1.bf16.msra.mxu0 0
  %190 = vmatprep.subr.bf16.mxu0 0
  %191 = vmatpush1.bf16.msra.mxu0 0
  %192 = vmatprep.subr.bf16.mxu0 0
  %193 = vmatpush1.bf16.msra.mxu0 0
  %194 = vmatprep.subr.bf16.mxu0 0
  %195 = vmatpush1.bf16.msra.mxu0 0
  %196 = vmatprep.subr.bf16.mxu0 0
  %197 = vmatpush1.bf16.msra.mxu0 0
  %198 = vmatprep.mubr.bf16.mxu0 0
  %199 = vmatmul.mubr.bf16.gmra.mrb[0].mxu0 %v164
  %v200 = vpop.f32.mrb[0].mxu0
  %v201 = vadd.f32 %v86, %v200
  %v202 = vpop.f32.mrb[0].mxu0
  %v203 = vadd.f32 %v90, %v202
  %v204 = vpop.f32.mrb[0].mxu0
  %v205 = vadd.f32 %v86, %v204
  %v206 = vpop.f32.mrb[0].mxu0
  %v207 = vadd.f32 %v90, %v206
  %208 = vdwg.mxu0
  %209 = vmatprep.subr.bf16.mxu0 %v150
  %210 = vmatpush1.bf16.msra.mxu0 %v149
  %211 = vmatprep.subr.bf16.mxu0 0
  %212 = vmatpush1.bf16.msra.mxu0 0
  %213 = vmatprep.subr.bf16.mxu0 0
  %214 = vmatpush1.bf16.msra.mxu0 0
  %215 = vmatprep.subr.bf16.mxu0 0
  %216 = vmatpush1.bf16.msra.mxu0 0
  %217 = vmatprep.subr.bf16.mxu0 0
  %218 = vmatpush1.bf16.msra.mxu0 0
  %219 = vmatprep.subr.bf16.mxu0 0
  %220 = vmatpush1.bf16.msra.mxu0 0
  %221 = vmatprep.subr.bf16.mxu0 0
  %222 = vmatpush1.bf16.msra.mxu0 0
  %223 = vmatprep.subr.bf16.mxu0 0
  %224 = vmatpush1.bf16.msra.mxu0 0
  %225 = vmatprep.subr.bf16.mxu0 0
  %226 = vmatpush1.bf16.msra.mxu0 0
  %227 = vmatprep.subr.bf16.mxu0 0
  %228 = vmatpush1.bf16.msra.mxu0 0
  %229 = vmatprep.subr.bf16.mxu0 0
  %230 = vmatpush1.bf16.msra.mxu0 0
  %231 = vmatprep.subr.bf16.mxu0 0
  %232 = vmatpush1.bf16.msra.mxu0 0
  %233 = vmatprep.subr.bf16.mxu0 0
  %234 = vmatpush1.bf16.msra.mxu0 0
  %235 = vmatprep.subr.bf16.mxu0 0
  %236 = vmatpush1.bf16.msra.mxu0 0
  %237 = vmatprep.subr.bf16.mxu0 0
  %238 = vmatpush1.bf16.msra.mxu0 0
  %239 = vmatprep.subr.bf16.mxu0 0
  %240 = vmatpush1.bf16.msra.mxu0 0
  %241 = vmatprep.mubr.bf16.mxu0 0
  %242 = vmatmul.mubr.bf16.gmra.mrb[0].mxu0 %v164
  %v243 = vpop.f32.mrb[0].mxu0
  %v244 = vadd.f32 %v94, %v243
  %v245 = vpop.f32.mrb[0].mxu0
  %v246 = vadd.f32 %v98, %v245
  %v247 = vpop.f32.mrb[0].mxu0
  %v248 = vadd.f32 %v94, %v247
  %v249 = vpop.f32.mrb[0].mxu0
  %v250 = vadd.f32 %v98, %v249
  %251 = vdwg.mxu0
  %252 = vmatprep.subr.bf16.mxu0 %v152
  %253 = vmatpush1.bf16.msra.mxu0 %v151
  %254 = vmatprep.subr.bf16.mxu0 0
  %255 = vmatpush1.bf16.msra.mxu0 0
  %256 = vmatprep.subr.bf16.mxu0 0
  %257 = vmatpush1.bf16.msra.mxu0 0
  %258 = vmatprep.subr.bf16.mxu0 0
  %259 = vmatpush1.bf16.msra.mxu0 0
  %260 = vmatprep.subr.bf16.mxu0 0
  %261 = vmatpush1.bf16.msra.mxu0 0
  %262 = vmatprep.subr.bf16.mxu0 0
  %263 = vmatpush1.bf16.msra.mxu0 0
  %264 = vmatprep.subr.bf16.mxu0 0
  %265 = vmatpush1.bf16.msra.mxu0 0
  %266 = vmatprep.subr.bf16.mxu0 0
  %267 = vmatpush1.bf16.msra.mxu0 0
  %268 = vmatprep.subr.bf16.mxu0 0
  %269 = vmatpush1.bf16.msra.mxu0 0
  %270 = vmatprep.subr.bf16.mxu0 0
  %271 = vmatpush1.bf16.msra.mxu0 0
  %272 = vmatprep.subr.bf16.mxu0 0
  %273 = vmatpush1.bf16.msra.mxu0 0
  %274 = vmatprep.subr.bf16.mxu0 0
  %275 = vmatpush1.bf16.msra.mxu0 0
  %276 = vmatprep.subr.bf16.mxu0 0
  %277 = vmatpush1.bf16.msra.mxu0 0
  %278 = vmatprep.subr.bf16.mxu0 0
  %279 = vmatpush1.bf16.msra.mxu0 0
  %280 = vmatprep.subr.bf16.mxu0 0
  %281 = vmatpush1.bf16.msra.mxu0 0
  %282 = vmatprep.subr.bf16.mxu0 0
  %283 = vmatpush1.bf16.msra.mxu0 0
  %284 = vmatprep.mubr.bf16.mxu0 0
  %285 = vmatmul.mubr.bf16.gmra.mrb[0].mxu0 %v164
  %v286 = vpop.f32.mrb[0].mxu0
  %v287 = vadd.f32 %v102, %v286
  %v288 = vpop.f32.mrb[0].mxu0
  %v289 = vadd.f32 %v106, %v288
  %v290 = vpop.f32.mrb[0].mxu0
  %v291 = vadd.f32 %v102, %v290
  %v292 = vpop.f32.mrb[0].mxu0
  %v293 = vadd.f32 %v106, %v292
  %294 = vdwg.mxu0
  %295 = vmatprep.subr.bf16.mxu0 %v154
  %296 = vmatpush1.bf16.msra.mxu0 %v153
  %297 = vmatprep.subr.bf16.mxu0 0
  %298 = vmatpush1.bf16.msra.mxu0 0
  %299 = vmatprep.subr.bf16.mxu0 0
  %300 = vmatpush1.bf16.msra.mxu0 0
  %301 = vmatprep.subr.bf16.mxu0 0
  %302 = vmatpush1.bf16.msra.mxu0 0
  %303 = vmatprep.subr.bf16.mxu0 0
  %304 = vmatpush1.bf16.msra.mxu0 0
  %305 = vmatprep.subr.bf16.mxu0 0
  %306 = vmatpush1.bf16.msra.mxu0 0
  %307 = vmatprep.subr.bf16.mxu0 0
  %308 = vmatpush1.bf16.msra.mxu0 0
  %309 = vmatprep.subr.bf16.mxu0 0
  %310 = vmatpush1.bf16.msra.mxu0 0
  %311 = vmatprep.subr.bf16.mxu0 0
  %312 = vmatpush1.bf16.msra.mxu0 0
  %313 = vmatprep.subr.bf16.mxu0 0
  %314 = vmatpush1.bf16.msra.mxu0 0
  %315 = vmatprep.subr.bf16.mxu0 0
  %316 = vmatpush1.bf16.msra.mxu0 0
  %317 = vmatprep.subr.bf16.mxu0 0
  %318 = vmatpush1.bf16.msra.mxu0 0
  %319 = vmatprep.subr.bf16.mxu0 0
  %320 = vmatpush1.bf16.msra.mxu0 0
  %321 = vmatprep.subr.bf16.mxu0 0
  %322 = vmatpush1.bf16.msra.mxu0 0
  %323 = vmatprep.subr.bf16.mxu0 0
  %324 = vmatpush1.bf16.msra.mxu0 0
  %325 = vmatprep.subr.bf16.mxu0 0
  %326 = vmatpush1.bf16.msra.mxu0 0
  %327 = vmatprep.mubr.bf16.mxu0 0
  %328 = vmatmul.mubr.bf16.gmra.mrb[0].mxu0 %v164
  %v329 = vpop.f32.mrb[0].mxu0
  %v330 = vadd.f32 %v110, %v329
  %v331 = vpop.f32.mrb[0].mxu0
  %v332 = vadd.f32 %v114, %v331
  %v333 = vpop.f32.mrb[0].mxu0
  %v334 = vadd.f32 %v110, %v333
  %v335 = vpop.f32.mrb[0].mxu0
  %v336 = vadd.f32 %v114, %v335
  %337 = vdwg.mxu0
  %v338 = vmax.f32 %v201, %v244
  %v339 = vmax.f32 %v203, %v246
  %v340 = vmax.f32 %v338, %v287
  %v341 = vmax.f32 %v339, %v289
  %v342 = vmax.f32 %v340, %v330
  %v343 = vmax.f32 %v341, %v332
  %v344 = vmax.f32 %v342, %v343
  %345 = vmax.xlane.f32.xlu0 %v344
  %v346 = vpop.xlane.xlu0 %345
  %vm347 = vcmask 1045504
  %v348 = vsel %vm347, %v205, -inf
  %v349 = vsel %vm347, %v207, -inf
  %v350 = vsel %vm347, %v248, -inf
  %v351 = vmax.f32 %v348, %v350
  %v352 = vsel %vm347, %v250, -inf
  %v353 = vmax.f32 %v349, %v352
  %v354 = vsel %vm347, %v291, -inf
  %v355 = vmax.f32 %v351, %v354
  %v356 = vsel %vm347, %v293, -inf
  %v357 = vmax.f32 %v353, %v356
  %v358 = vsel %vm347, %v334, -inf
  %v359 = vmax.f32 %v355, %v358
  %v360 = vsel %vm347, %v336, -inf
  %v361 = vmax.f32 %v357, %v360
  %v362 = vmax.f32 %v359, %v361
  %363 = vmax.xlane.f32.xlu0 %v362
  %v364 = vpop.xlane.xlu0 %363
  %v365 = vsub.f32 %v201, %v346
  %v366 = vsub.f32 %v203, %v346
  %v367 = vsub.f32 %v244, %v346
  %v368 = vsub.f32 %v246, %v346
  %v369 = vsub.f32 %v287, %v346
  %v370 = vsub.f32 %v289, %v346
  %v371 = vsub.f32 %v330, %v346
  %v372 = vsub.f32 %v332, %v346
  %v373 = vsub.f32 %v205, %v364
  %v374 = vsub.f32 %v207, %v364
  %v375 = vsub.f32 %v248, %v364
  %v376 = vsub.f32 %v250, %v364
  %v377 = vsub.f32 %v291, %v364
  %v378 = vsub.f32 %v293, %v364
  %v379 = vsub.f32 %v334, %v364
  %v380 = vsub.f32 %v336, %v364
  %v381 = vmul.f32 %v365, 1.442695
  %v382 = vpow.pop %v381
  %v383 = vmul.f32 %v366, 1.442695
  %v384 = vpow.pop %v383
  %v385 = vmul.f32 %v367, 1.442695
  %v386 = vpow.pop %v385
  %v387 = vmul.f32 %v368, 1.442695
  %v388 = vpow.pop %v387
  %v389 = vmul.f32 %v369, 1.442695
  %v390 = vpow.pop %v389
  %v391 = vmul.f32 %v370, 1.442695
  %v392 = vpow.pop %v391
  %v393 = vmul.f32 %v371, 1.442695
  %v394 = vpow.pop %v393
  %v395 = vmul.f32 %v372, 1.442695
  %v396 = vpow.pop %v395
  %v397 = vmul.f32 %v373, 1.442695
  %v398 = vpow.pop %v397
  %v399 = vmul.f32 %v374, 1.442695
  %v400 = vpow.pop %v399
  %v401 = vmul.f32 %v375, 1.442695
  %v402 = vpow.pop %v401
  %v403 = vmul.f32 %v376, 1.442695
  %v404 = vpow.pop %v403
  %v405 = vmul.f32 %v377, 1.442695
  %v406 = vpow.pop %v405
  %v407 = vmul.f32 %v378, 1.442695
  %v408 = vpow.pop %v407
  %v409 = vmul.f32 %v379, 1.442695
  %v410 = vpow.pop %v409
  %v411 = vmul.f32 %v380, 1.442695
  %v412 = vpow.pop %v411
  %v413 = vpack.c.bf16 %v398, %v382
  %v414 = vpack.c.bf16 %v400, %v384
  %v415 = vpack.c.bf16 %v402, %v386
  %v416 = vpack.c.bf16 %v404, %v388
  %v417 = vpack.c.bf16 %v406, %v390
  %v418 = vpack.c.bf16 %v408, %v392
  %v419 = vpack.c.bf16 %v410, %v394
  %v420 = vpack.c.bf16 %v412, %v396
  %v421 = vld [vmem:[%s3] sm:$0xf]
  %v422 = vld [vmem:[%s3 + $0x4] sm:$0xf]
  %v423 = vld [vmem:[%s3 + $0x8] sm:$0xf]
  %v424 = vld [vmem:[%s3 + $0xc] sm:$0xf]
  %v425 = vld [vmem:[%s3 + $0x10] sm:$0xf]
  %v426 = vld [vmem:[%s3 + $0x14] sm:$0xf]
  %v427 = vld [vmem:[%s3 + $0x18] sm:$0xf]
  %v428 = vld [vmem:[%s3 + $0x1c] sm:$0xf]
  %v429 = vld [vmem:[%s3 + $0x20] sm:$0xf]
  %v430 = vld [vmem:[%s3 + $0x24] sm:$0xf]
  %v431 = vld [vmem:[%s3 + $0x28] sm:$0xf]
  %v432 = vld [vmem:[%s3 + $0x2c] sm:$0xf]
  %v433 = vld [vmem:[%s3 + $0x30] sm:$0xf]
  %v434 = vld [vmem:[%s3 + $0x34] sm:$0xf]
  %v435 = vld [vmem:[%s3 + $0x38] sm:$0xf]
  %v436 = vld [vmem:[%s3 + $0x3c] sm:$0xf]
  %v437 = vld [vmem:[%s3 + $0x40] sm:$0xf]
  %v438 = vld [vmem:[%s3 + $0x44] sm:$0xf]
  %v439 = vld [vmem:[%s3 + $0x48] sm:$0xf]
  %v440 = vld [vmem:[%s3 + $0x4c] sm:$0xf]
  %v441 = vld [vmem:[%s3 + $0x50] sm:$0xf]
  %v442 = vld [vmem:[%s3 + $0x54] sm:$0xf]
  %v443 = vld [vmem:[%s3 + $0x58] sm:$0xf]
  %v444 = vld [vmem:[%s3 + $0x5c] sm:$0xf]
  %v445 = vld [vmem:[%s3 + $0x60] sm:$0xf]
  %v446 = vld [vmem:[%s3 + $0x64] sm:$0xf]
  %v447 = vld [vmem:[%s3 + $0x68] sm:$0xf]
  %v448 = vld [vmem:[%s3 + $0x6c] sm:$0xf]
  %v449 = vld [vmem:[%s3 + $0x70] sm:$0xf]
  %v450 = vld [vmem:[%s3 + $0x74] sm:$0xf]
  %v451 = vld [vmem:[%s3 + $0x78] sm:$0xf]
  %v452 = vld [vmem:[%s3 + $0x7c] sm:$0xf]
  %v453 = vld [vmem:[%s3 + $0x80] sm:$0xf]
  %v454 = vld [vmem:[%s3 + $0x84] sm:$0xf]
  %v455 = vld [vmem:[%s3 + $0x88] sm:$0xf]
  %v456 = vld [vmem:[%s3 + $0x8c] sm:$0xf]
  %v457 = vld [vmem:[%s3 + $0x90] sm:$0xf]
  %v458 = vld [vmem:[%s3 + $0x94] sm:$0xf]
  %v459 = vld [vmem:[%s3 + $0x98] sm:$0xf]
  %v460 = vld [vmem:[%s3 + $0x9c] sm:$0xf]
  %v461 = vld [vmem:[%s3 + $0xa0] sm:$0xf]
  %v462 = vld [vmem:[%s3 + $0xa4] sm:$0xf]
  %v463 = vld [vmem:[%s3 + $0xa8] sm:$0xf]
  %v464 = vld [vmem:[%s3 + $0xac] sm:$0xf]
  %v465 = vld [vmem:[%s3 + $0xb0] sm:$0xf]
  %v466 = vld [vmem:[%s3 + $0xb4] sm:$0xf]
  %v467 = vld [vmem:[%s3 + $0xb8] sm:$0xf]
  %v468 = vld [vmem:[%s3 + $0xbc] sm:$0xf]
  %v469 = vld [vmem:[%s3 + $0xc0] sm:$0xf]
  %v470 = vld [vmem:[%s3 + $0xc4] sm:$0xf]
  %v471 = vld [vmem:[%s3 + $0xc8] sm:$0xf]
  %v472 = vld [vmem:[%s3 + $0xcc] sm:$0xf]
  %v473 = vld [vmem:[%s3 + $0xd0] sm:$0xf]
  %v474 = vld [vmem:[%s3 + $0xd4] sm:$0xf]
  %v475 = vld [vmem:[%s3 + $0xd8] sm:$0xf]
  %v476 = vld [vmem:[%s3 + $0xdc] sm:$0xf]
  %v477 = vld [vmem:[%s3 + $0xe0] sm:$0xf]
  %v478 = vld [vmem:[%s3 + $0xe4] sm:$0xf]
  %v479 = vld [vmem:[%s3 + $0xe8] sm:$0xf]
  %v480 = vld [vmem:[%s3 + $0xec] sm:$0xf]
  %v481 = vld [vmem:[%s3 + $0xf0] sm:$0xf]
  %v482 = vld [vmem:[%s3 + $0xf4] sm:$0xf]
  %v483 = vld [vmem:[%s3 + $0xf8] sm:$0xf]
  %v484 = vld [vmem:[%s3 + $0xfc] sm:$0xf]
  %v485 = vld [vmem:[%s3 + $0x100] sm:$0xf]
  %v486 = vld [vmem:[%s3 + $0x104] sm:$0xf]
  %v487 = vld [vmem:[%s3 + $0x108] sm:$0xf]
  %v488 = vld [vmem:[%s3 + $0x10c] sm:$0xf]
  %v489 = vld [vmem:[%s3 + $0x110] sm:$0xf]
  %v490 = vld [vmem:[%s3 + $0x114] sm:$0xf]
  %v491 = vld [vmem:[%s3 + $0x118] sm:$0xf]
  %v492 = vld [vmem:[%s3 + $0x11c] sm:$0xf]
  %v493 = vld [vmem:[%s3 + $0x120] sm:$0xf]
  %v494 = vld [vmem:[%s3 + $0x124] sm:$0xf]
  %v495 = vld [vmem:[%s3 + $0x128] sm:$0xf]
  %v496 = vld [vmem:[%s3 + $0x12c] sm:$0xf]
  %v497 = vld [vmem:[%s3 + $0x130] sm:$0xf]
  %v498 = vld [vmem:[%s3 + $0x134] sm:$0xf]
  %v499 = vld [vmem:[%s3 + $0x138] sm:$0xf]
  %v500 = vld [vmem:[%s3 + $0x13c] sm:$0xf]
  %v501 = vld [vmem:[%s3 + $0x140] sm:$0xf]
  %v502 = vld [vmem:[%s3 + $0x144] sm:$0xf]
  %v503 = vld [vmem:[%s3 + $0x148] sm:$0xf]
  %v504 = vld [vmem:[%s3 + $0x14c] sm:$0xf]
  %v505 = vld [vmem:[%s3 + $0x150] sm:$0xf]
  %v506 = vld [vmem:[%s3 + $0x154] sm:$0xf]
  %v507 = vld [vmem:[%s3 + $0x158] sm:$0xf]
  %v508 = vld [vmem:[%s3 + $0x15c] sm:$0xf]
  %v509 = vld [vmem:[%s3 + $0x160] sm:$0xf]
  %v510 = vld [vmem:[%s3 + $0x164] sm:$0xf]
  %v511 = vld [vmem:[%s3 + $0x168] sm:$0xf]
  %v512 = vld [vmem:[%s3 + $0x16c] sm:$0xf]
  %v513 = vld [vmem:[%s3 + $0x170] sm:$0xf]
  %v514 = vld [vmem:[%s3 + $0x174] sm:$0xf]
  %v515 = vld [vmem:[%s3 + $0x178] sm:$0xf]
  %v516 = vld [vmem:[%s3 + $0x17c] sm:$0xf]
  %v517 = vld [vmem:[%s3 + $0x180] sm:$0xf]
  %v518 = vld [vmem:[%s3 + $0x184] sm:$0xf]
  %v519 = vld [vmem:[%s3 + $0x188] sm:$0xf]
  %v520 = vld [vmem:[%s3 + $0x18c] sm:$0xf]
  %v521 = vld [vmem:[%s3 + $0x190] sm:$0xf]
  %v522 = vld [vmem:[%s3 + $0x194] sm:$0xf]
  %v523 = vld [vmem:[%s3 + $0x198] sm:$0xf]
  %v524 = vld [vmem:[%s3 + $0x19c] sm:$0xf]
  %v525 = vld [vmem:[%s3 + $0x1a0] sm:$0xf]
  %v526 = vld [vmem:[%s3 + $0x1a4] sm:$0xf]
  %v527 = vld [vmem:[%s3 + $0x1a8] sm:$0xf]
  %v528 = vld [vmem:[%s3 + $0x1ac] sm:$0xf]
  %v529 = vld [vmem:[%s3 + $0x1b0] sm:$0xf]
  %v530 = vld [vmem:[%s3 + $0x1b4] sm:$0xf]
  %v531 = vld [vmem:[%s3 + $0x1b8] sm:$0xf]
  %v532 = vld [vmem:[%s3 + $0x1bc] sm:$0xf]
  %v533 = vld [vmem:[%s3 + $0x1c0] sm:$0xf]
  %v534 = vld [vmem:[%s3 + $0x1c4] sm:$0xf]
  %v535 = vld [vmem:[%s3 + $0x1c8] sm:$0xf]
  %v536 = vld [vmem:[%s3 + $0x1cc] sm:$0xf]
  %v537 = vld [vmem:[%s3 + $0x1d0] sm:$0xf]
  %v538 = vld [vmem:[%s3 + $0x1d4] sm:$0xf]
  %v539 = vld [vmem:[%s3 + $0x1d8] sm:$0xf]
  %v540 = vld [vmem:[%s3 + $0x1dc] sm:$0xf]
  %v541 = vld [vmem:[%s3 + $0x1e0] sm:$0xf]
  %v542 = vld [vmem:[%s3 + $0x1e4] sm:$0xf]
  %v543 = vld [vmem:[%s3 + $0x1e8] sm:$0xf]
  %v544 = vld [vmem:[%s3 + $0x1ec] sm:$0xf]
  %v545 = vld [vmem:[%s3 + $0x1f0] sm:$0xf]
  %v546 = vld [vmem:[%s3 + $0x1f4] sm:$0xf]
  %v547 = vld [vmem:[%s3 + $0x1f8] sm:$0xf]
  %v548 = vld [vmem:[%s3 + $0x1fc] sm:$0xf]
  %v677 = vunpack.c.l.b16 %v421
  %v678 = vunpack.c.l.b16 %v422
  %v679 = vunpack.c.l.b16 %v423
  %v680 = vunpack.c.l.b16 %v424
  %v681 = vunpack.c.l.b16 %v425
  %v682 = vunpack.c.l.b16 %v426
  %v683 = vunpack.c.l.b16 %v427
  %v684 = vunpack.c.l.b16 %v428
  %v685 = vunpack.c.l.b16 %v429
  %v686 = vunpack.c.l.b16 %v430
  %v687 = vunpack.c.l.b16 %v431
  %v688 = vunpack.c.l.b16 %v432
  %v689 = vunpack.c.l.b16 %v433
  %v690 = vunpack.c.l.b16 %v434
  %v691 = vunpack.c.l.b16 %v435
  %v692 = vunpack.c.l.b16 %v436
  %v693 = vunpack.c.l.b16 %v437
  %v694 = vunpack.c.l.b16 %v438
  %v695 = vunpack.c.l.b16 %v439
  %v696 = vunpack.c.l.b16 %v440
  %v697 = vunpack.c.l.b16 %v441
  %v698 = vunpack.c.l.b16 %v442
  %v699 = vunpack.c.l.b16 %v443
  %v700 = vunpack.c.l.b16 %v444
  %v701 = vunpack.c.l.b16 %v445
  %v702 = vunpack.c.l.b16 %v446
  %v703 = vunpack.c.l.b16 %v447
  %v704 = vunpack.c.l.b16 %v448
  %v705 = vunpack.c.l.b16 %v449
  %v706 = vunpack.c.l.b16 %v450
  %v707 = vunpack.c.l.b16 %v451
  %v708 = vunpack.c.l.b16 %v452
  %v709 = vunpack.c.l.b16 %v453
  %v710 = vunpack.c.l.b16 %v454
  %v711 = vunpack.c.l.b16 %v455
  %v712 = vunpack.c.l.b16 %v456
  %v713 = vunpack.c.l.b16 %v457
  %v714 = vunpack.c.l.b16 %v458
  %v715 = vunpack.c.l.b16 %v459
  %v716 = vunpack.c.l.b16 %v460
  %v717 = vunpack.c.l.b16 %v461
  %v718 = vunpack.c.l.b16 %v462
  %v719 = vunpack.c.l.b16 %v463
  %v720 = vunpack.c.l.b16 %v464
  %v721 = vunpack.c.l.b16 %v465
  %v722 = vunpack.c.l.b16 %v466
  %v723 = vunpack.c.l.b16 %v467
  %v724 = vunpack.c.l.b16 %v468
  %v725 = vunpack.c.l.b16 %v469
  %v726 = vunpack.c.l.b16 %v470
  %v727 = vunpack.c.l.b16 %v471
  %v728 = vunpack.c.l.b16 %v472
  %v729 = vunpack.c.l.b16 %v473
  %v730 = vunpack.c.l.b16 %v474
  %v731 = vunpack.c.l.b16 %v475
  %v732 = vunpack.c.l.b16 %v476
  %v733 = vunpack.c.l.b16 %v477
  %v734 = vunpack.c.l.b16 %v478
  %v735 = vunpack.c.l.b16 %v479
  %v736 = vunpack.c.l.b16 %v480
  %v737 = vunpack.c.l.b16 %v481
  %v738 = vunpack.c.l.b16 %v482
  %v739 = vunpack.c.l.b16 %v483
  %v740 = vunpack.c.l.b16 %v484
  %v741 = vunpack.c.l.b16 %v485
  %v742 = vunpack.c.l.b16 %v486
  %v743 = vunpack.c.l.b16 %v487
  %v744 = vunpack.c.l.b16 %v488
  %v745 = vunpack.c.l.b16 %v489
  %v746 = vunpack.c.l.b16 %v490
  %v747 = vunpack.c.l.b16 %v491
  %v748 = vunpack.c.l.b16 %v492
  %v749 = vunpack.c.l.b16 %v493
  %v750 = vunpack.c.l.b16 %v494
  %v751 = vunpack.c.l.b16 %v495
  %v752 = vunpack.c.l.b16 %v496
  %v753 = vunpack.c.l.b16 %v497
  %v754 = vunpack.c.l.b16 %v498
  %v755 = vunpack.c.l.b16 %v499
  %v756 = vunpack.c.l.b16 %v500
  %v757 = vunpack.c.l.b16 %v501
  %v758 = vunpack.c.l.b16 %v502
  %v759 = vunpack.c.l.b16 %v503
  %v760 = vunpack.c.l.b16 %v504
  %v761 = vunpack.c.l.b16 %v505
  %v762 = vunpack.c.l.b16 %v506
  %v763 = vunpack.c.l.b16 %v507
  %v764 = vunpack.c.l.b16 %v508
  %v765 = vunpack.c.l.b16 %v509
  %v766 = vunpack.c.l.b16 %v510
  %v767 = vunpack.c.l.b16 %v511
  %v768 = vunpack.c.l.b16 %v512
  %v769 = vunpack.c.l.b16 %v513
  %v770 = vunpack.c.l.b16 %v514
  %v771 = vunpack.c.l.b16 %v515
  %v772 = vunpack.c.l.b16 %v516
  %v773 = vunpack.c.l.b16 %v517
  %v774 = vunpack.c.l.b16 %v518
  %v775 = vunpack.c.l.b16 %v519
  %v776 = vunpack.c.l.b16 %v520
  %v777 = vunpack.c.l.b16 %v521
  %v778 = vunpack.c.l.b16 %v522
  %v779 = vunpack.c.l.b16 %v523
  %v780 = vunpack.c.l.b16 %v524
  %v781 = vunpack.c.l.b16 %v525
  %v782 = vunpack.c.l.b16 %v526
  %v783 = vunpack.c.l.b16 %v527
  %v784 = vunpack.c.l.b16 %v528
  %v785 = vunpack.c.l.b16 %v529
  %v786 = vunpack.c.l.b16 %v530
  %v787 = vunpack.c.l.b16 %v531
  %v788 = vunpack.c.l.b16 %v532
  %v789 = vunpack.c.l.b16 %v533
  %v790 = vunpack.c.l.b16 %v534
  %v791 = vunpack.c.l.b16 %v535
  %v792 = vunpack.c.l.b16 %v536
  %v793 = vunpack.c.l.b16 %v537
  %v794 = vunpack.c.l.b16 %v538
  %v795 = vunpack.c.l.b16 %v539
  %v796 = vunpack.c.l.b16 %v540
  %v797 = vunpack.c.l.b16 %v541
  %v798 = vunpack.c.l.b16 %v542
  %v799 = vunpack.c.l.b16 %v543
  %v800 = vunpack.c.l.b16 %v544
  %v801 = vunpack.c.l.b16 %v545
  %v802 = vunpack.c.l.b16 %v546
  %v803 = vunpack.c.l.b16 %v547
  %v804 = vunpack.c.l.b16 %v548
  %v805 = vpack.c.b16 %v678, %v677
  %v806 = vpack.c.b16 %v680, %v679
  %v807 = vpack.c.b16 %v682, %v681
  %v808 = vpack.c.b16 %v684, %v683
  %v809 = vpack.c.b16 %v686, %v685
  %v810 = vpack.c.b16 %v688, %v687
  %v811 = vpack.c.b16 %v690, %v689
  %v812 = vpack.c.b16 %v692, %v691
  %v813 = vpack.c.b16 %v694, %v693
  %v814 = vpack.c.b16 %v696, %v695
  %v815 = vpack.c.b16 %v698, %v697
  %v816 = vpack.c.b16 %v700, %v699
  %v817 = vpack.c.b16 %v702, %v701
  %v818 = vpack.c.b16 %v704, %v703
  %v819 = vpack.c.b16 %v706, %v705
  %v820 = vpack.c.b16 %v708, %v707
  %v821 = vpack.c.b16 %v710, %v709
  %v822 = vpack.c.b16 %v712, %v711
  %v823 = vpack.c.b16 %v714, %v713
  %v824 = vpack.c.b16 %v716, %v715
  %v825 = vpack.c.b16 %v718, %v717
  %v826 = vpack.c.b16 %v720, %v719
  %v827 = vpack.c.b16 %v722, %v721
  %v828 = vpack.c.b16 %v724, %v723
  %v829 = vpack.c.b16 %v726, %v725
  %v830 = vpack.c.b16 %v728, %v727
  %v831 = vpack.c.b16 %v730, %v729
  %v832 = vpack.c.b16 %v732, %v731
  %v833 = vpack.c.b16 %v734, %v733
  %v834 = vpack.c.b16 %v736, %v735
  %v835 = vpack.c.b16 %v738, %v737
  %v836 = vpack.c.b16 %v740, %v739
  %v837 = vpack.c.b16 %v742, %v741
  %v838 = vpack.c.b16 %v744, %v743
  %v839 = vpack.c.b16 %v746, %v745
  %v840 = vpack.c.b16 %v748, %v747
  %v841 = vpack.c.b16 %v750, %v749
  %v842 = vpack.c.b16 %v752, %v751
  %v843 = vpack.c.b16 %v754, %v753
  %v844 = vpack.c.b16 %v756, %v755
  %v845 = vpack.c.b16 %v758, %v757
  %v846 = vpack.c.b16 %v760, %v759
  %v847 = vpack.c.b16 %v762, %v761
  %v848 = vpack.c.b16 %v764, %v763
  %v849 = vpack.c.b16 %v766, %v765
  %v850 = vpack.c.b16 %v768, %v767
  %v851 = vpack.c.b16 %v770, %v769
  %v852 = vpack.c.b16 %v772, %v771
  %v853 = vpack.c.b16 %v774, %v773
  %v854 = vpack.c.b16 %v776, %v775
  %v855 = vpack.c.b16 %v778, %v777
  %v856 = vpack.c.b16 %v780, %v779
  %v857 = vpack.c.b16 %v782, %v781
  %v858 = vpack.c.b16 %v784, %v783
  %v859 = vpack.c.b16 %v786, %v785
  %v860 = vpack.c.b16 %v788, %v787
  %v861 = vpack.c.b16 %v790, %v789
  %v862 = vpack.c.b16 %v792, %v791
  %v863 = vpack.c.b16 %v794, %v793
  %v864 = vpack.c.b16 %v796, %v795
  %v865 = vpack.c.b16 %v798, %v797
  %v866 = vpack.c.b16 %v800, %v799
  %v867 = vpack.c.b16 %v802, %v801
  %v868 = vpack.c.b16 %v804, %v803
  %933 = vmatprep.subr.bf16.mxu0 0
  %934 = vmatpush1.bf16.msra.mxu0 %v805
  %935 = vmatprep.subr.bf16.mxu0 0
  %936 = vmatpush1.bf16.msra.mxu0 %v806
  %937 = vmatprep.subr.bf16.mxu0 0
  %938 = vmatpush1.bf16.msra.mxu0 %v807
  %939 = vmatprep.subr.bf16.mxu0 0
  %940 = vmatpush1.bf16.msra.mxu0 %v808
  %941 = vmatprep.subr.bf16.mxu0 0
  %942 = vmatpush1.bf16.msra.mxu0 %v809
  %943 = vmatprep.subr.bf16.mxu0 0
  %944 = vmatpush1.bf16.msra.mxu0 %v810
  %945 = vmatprep.subr.bf16.mxu0 0
  %946 = vmatpush1.bf16.msra.mxu0 %v811
  %947 = vmatprep.subr.bf16.mxu0 0
  %948 = vmatpush1.bf16.msra.mxu0 %v812
  %949 = vmatprep.subr.bf16.mxu0 0
  %950 = vmatpush1.bf16.msra.mxu0 %v813
  %951 = vmatprep.subr.bf16.mxu0 0
  %952 = vmatpush1.bf16.msra.mxu0 %v814
  %953 = vmatprep.subr.bf16.mxu0 0
  %954 = vmatpush1.bf16.msra.mxu0 %v815
  %955 = vmatprep.subr.bf16.mxu0 0
  %956 = vmatpush1.bf16.msra.mxu0 %v816
  %957 = vmatprep.subr.bf16.mxu0 0
  %958 = vmatpush1.bf16.msra.mxu0 %v817
  %959 = vmatprep.subr.bf16.mxu0 0
  %960 = vmatpush1.bf16.msra.mxu0 %v818
  %961 = vmatprep.subr.bf16.mxu0 0
  %962 = vmatpush1.bf16.msra.mxu0 %v819
  %963 = vmatprep.subr.bf16.mxu0 0
  %964 = vmatpush1.bf16.msra.mxu0 %v820
  %965 = vmatprep.mubr.bf16.mxu0 %v414
  %966 = vmatmul.mubr.bf16.gmra.mrb[0].mxu0 %v413
  %v967 = vpop.f32.mrb[0].mxu0
  %v968 = vadd.f32 0.0, %v967
  %v969 = vpop.f32.mrb[0].mxu0
  %v970 = vpop.f32.mrb[0].mxu0
  %v971 = vadd.f32 0.0, %v970
  %v972 = vpop.f32.mrb[0].mxu0
  %973 = vdwg.mxu0
  %974 = vmatprep.subr.bf16.mxu0 0
  %975 = vmatpush1.bf16.msra.mxu0 %v821
  %976 = vmatprep.subr.bf16.mxu0 0
  %977 = vmatpush1.bf16.msra.mxu0 %v822
  %978 = vmatprep.subr.bf16.mxu0 0
  %979 = vmatpush1.bf16.msra.mxu0 %v823
  %980 = vmatprep.subr.bf16.mxu0 0
  %981 = vmatpush1.bf16.msra.mxu0 %v824
  %982 = vmatprep.subr.bf16.mxu0 0
  %983 = vmatpush1.bf16.msra.mxu0 %v825
  %984 = vmatprep.subr.bf16.mxu0 0
  %985 = vmatpush1.bf16.msra.mxu0 %v826
  %986 = vmatprep.subr.bf16.mxu0 0
  %987 = vmatpush1.bf16.msra.mxu0 %v827
  %988 = vmatprep.subr.bf16.mxu0 0
  %989 = vmatpush1.bf16.msra.mxu0 %v828
  %990 = vmatprep.subr.bf16.mxu0 0
  %991 = vmatpush1.bf16.msra.mxu0 %v829
  %992 = vmatprep.subr.bf16.mxu0 0
  %993 = vmatpush1.bf16.msra.mxu0 %v830
  %994 = vmatprep.subr.bf16.mxu0 0
  %995 = vmatpush1.bf16.msra.mxu0 %v831
  %996 = vmatprep.subr.bf16.mxu0 0
  %997 = vmatpush1.bf16.msra.mxu0 %v832
  %998 = vmatprep.subr.bf16.mxu0 0
  %999 = vmatpush1.bf16.msra.mxu0 %v833
  %1000 = vmatprep.subr.bf16.mxu0 0
  %1001 = vmatpush1.bf16.msra.mxu0 %v834
  %1002 = vmatprep.subr.bf16.mxu0 0
  %1003 = vmatpush1.bf16.msra.mxu0 %v835
  %1004 = vmatprep.subr.bf16.mxu0 0
  %1005 = vmatpush1.bf16.msra.mxu0 %v836
  %1006 = vmatprep.mubr.bf16.mxu0 %v416
  %1007 = vmatmul.mubr.bf16.gmra.mrb[0].mxu0 %v415
  %v1008 = vpop.f32.mrb[0].mxu0
  %v1009 = vadd.f32 %v968, %v1008
  %v1010 = vpop.f32.mrb[0].mxu0
  %v1011 = vpop.f32.mrb[0].mxu0
  %v1012 = vadd.f32 %v971, %v1011
  %v1013 = vpop.f32.mrb[0].mxu0
  %1014 = vdwg.mxu0
  %1015 = vmatprep.subr.bf16.mxu0 0
  %1016 = vmatpush1.bf16.msra.mxu0 %v837
  %1017 = vmatprep.subr.bf16.mxu0 0
  %1018 = vmatpush1.bf16.msra.mxu0 %v838
  %1019 = vmatprep.subr.bf16.mxu0 0
  %1020 = vmatpush1.bf16.msra.mxu0 %v839
  %1021 = vmatprep.subr.bf16.mxu0 0
  %1022 = vmatpush1.bf16.msra.mxu0 %v840
  %1023 = vmatprep.subr.bf16.mxu0 0
  %1024 = vmatpush1.bf16.msra.mxu0 %v841
  %1025 = vmatprep.subr.bf16.mxu0 0
  %1026 = vmatpush1.bf16.msra.mxu0 %v842
  %1027 = vmatprep.subr.bf16.mxu0 0
  %1028 = vmatpush1.bf16.msra.mxu0 %v843
  %1029 = vmatprep.subr.bf16.mxu0 0
  %1030 = vmatpush1.bf16.msra.mxu0 %v844
  %1031 = vmatprep.subr.bf16.mxu0 0
  %1032 = vmatpush1.bf16.msra.mxu0 %v845
  %1033 = vmatprep.subr.bf16.mxu0 0
  %1034 = vmatpush1.bf16.msra.mxu0 %v846
  %1035 = vmatprep.subr.bf16.mxu0 0
  %1036 = vmatpush1.bf16.msra.mxu0 %v847
  %1037 = vmatprep.subr.bf16.mxu0 0
  %1038 = vmatpush1.bf16.msra.mxu0 %v848
  %1039 = vmatprep.subr.bf16.mxu0 0
  %1040 = vmatpush1.bf16.msra.mxu0 %v849
  %1041 = vmatprep.subr.bf16.mxu0 0
  %1042 = vmatpush1.bf16.msra.mxu0 %v850
  %1043 = vmatprep.subr.bf16.mxu0 0
  %1044 = vmatpush1.bf16.msra.mxu0 %v851
  %1045 = vmatprep.subr.bf16.mxu0 0
  %1046 = vmatpush1.bf16.msra.mxu0 %v852
  %1047 = vmatprep.mubr.bf16.mxu0 %v418
  %1048 = vmatmul.mubr.bf16.gmra.mrb[0].mxu0 %v417
  %v1049 = vpop.f32.mrb[0].mxu0
  %v1050 = vadd.f32 %v1009, %v1049
  %v1051 = vpop.f32.mrb[0].mxu0
  %v1052 = vpop.f32.mrb[0].mxu0
  %v1053 = vadd.f32 %v1012, %v1052
  %v1054 = vpop.f32.mrb[0].mxu0
  %1055 = vdwg.mxu0
  %1056 = vmatprep.subr.bf16.mxu0 0
  %1057 = vmatpush1.bf16.msra.mxu0 %v853
  %1058 = vmatprep.subr.bf16.mxu0 0
  %1059 = vmatpush1.bf16.msra.mxu0 %v854
  %1060 = vmatprep.subr.bf16.mxu0 0
  %1061 = vmatpush1.bf16.msra.mxu0 %v855
  %1062 = vmatprep.subr.bf16.mxu0 0
  %1063 = vmatpush1.bf16.msra.mxu0 %v856
  %1064 = vmatprep.subr.bf16.mxu0 0
  %1065 = vmatpush1.bf16.msra.mxu0 %v857
  %1066 = vmatprep.subr.bf16.mxu0 0
  %1067 = vmatpush1.bf16.msra.mxu0 %v858
  %1068 = vmatprep.subr.bf16.mxu0 0
  %1069 = vmatpush1.bf16.msra.mxu0 %v859
  %1070 = vmatprep.subr.bf16.mxu0 0
  %1071 = vmatpush1.bf16.msra.mxu0 %v860
  %1072 = vmatprep.subr.bf16.mxu0 0
  %1073 = vmatpush1.bf16.msra.mxu0 %v861
  %1074 = vmatprep.subr.bf16.mxu0 0
  %1075 = vmatpush1.bf16.msra.mxu0 %v862
  %1076 = vmatprep.subr.bf16.mxu0 0
  %1077 = vmatpush1.bf16.msra.mxu0 %v863
  %1078 = vmatprep.subr.bf16.mxu0 0
  %1079 = vmatpush1.bf16.msra.mxu0 %v864
  %1080 = vmatprep.subr.bf16.mxu0 0
  %1081 = vmatpush1.bf16.msra.mxu0 %v865
  %1082 = vmatprep.subr.bf16.mxu0 0
  %1083 = vmatpush1.bf16.msra.mxu0 %v866
  %1084 = vmatprep.subr.bf16.mxu0 0
  %1085 = vmatpush1.bf16.msra.mxu0 %v867
  %1086 = vmatprep.subr.bf16.mxu0 0
  %1087 = vmatpush1.bf16.msra.mxu0 %v868
  %1088 = vmatprep.mubr.bf16.mxu0 %v420
  %1089 = vmatmul.mubr.bf16.gmra.mrb[0].mxu0 %v419
  %v1090 = vpop.f32.mrb[0].mxu0
  %v1091 = vadd.f32 %v1050, %v1090
  %v1092 = vpop.f32.mrb[0].mxu0
  %v1093 = vpop.f32.mrb[0].mxu0
  %v1094 = vadd.f32 %v1053, %v1093
  %v1095 = vpop.f32.mrb[0].mxu0
  %1096 = vdwg.mxu0
  %v1097 = vpack.c.bf16 %v1094, %v1091
  %v1098 = vld [vmem:[%s4] sm:$0xff]
  %v1099 = vld [vmem:[%s4 + $0x8] sm:$0xff]
  %v1100 = vld [vmem:[%s4 + $0x10] sm:$0xff]
  %v1101 = vld [vmem:[%s4 + $0x18] sm:$0xff]
  %v1102 = vld [vmem:[%s4 + $0x20] sm:$0xff]
  %v1103 = vld [vmem:[%s4 + $0x28] sm:$0xff]
  %v1104 = vld [vmem:[%s4 + $0x30] sm:$0xff]
  %v1105 = vld [vmem:[%s4 + $0x38] sm:$0xff]
  %v1106 = vld [vmem:[%s4 + $0x40] sm:$0xff]
  %v1107 = vld [vmem:[%s4 + $0x48] sm:$0xff]
  %v1108 = vld [vmem:[%s4 + $0x50] sm:$0xff]
  %v1109 = vld [vmem:[%s4 + $0x58] sm:$0xff]
  %v1110 = vld [vmem:[%s4 + $0x60] sm:$0xff]
  %v1111 = vld [vmem:[%s4 + $0x68] sm:$0xff]
  %v1112 = vld [vmem:[%s4 + $0x70] sm:$0xff]
  %v1113 = vld [vmem:[%s4 + $0x78] sm:$0xff]
  %v1130 = vunpack.c.l.b16 %v1098
  %v1131 = vunpack.c.h.b16 %v1098
  %v1132 = vunpack.c.l.b16 %v1099
  %v1133 = vunpack.c.h.b16 %v1099
  %v1134 = vunpack.c.l.b16 %v1100
  %v1135 = vunpack.c.h.b16 %v1100
  %v1136 = vunpack.c.l.b16 %v1101
  %v1137 = vunpack.c.h.b16 %v1101
  %v1138 = vunpack.c.l.b16 %v1102
  %v1139 = vunpack.c.h.b16 %v1102
  %v1140 = vunpack.c.l.b16 %v1103
  %v1141 = vunpack.c.h.b16 %v1103
  %v1142 = vunpack.c.l.b16 %v1104
  %v1143 = vunpack.c.h.b16 %v1104
  %v1144 = vunpack.c.l.b16 %v1105
  %v1145 = vunpack.c.h.b16 %v1105
  %v1146 = vunpack.c.l.b16 %v1106
  %v1147 = vunpack.c.h.b16 %v1106
  %v1148 = vunpack.c.l.b16 %v1107
  %v1149 = vunpack.c.h.b16 %v1107
  %v1150 = vunpack.c.l.b16 %v1108
  %v1151 = vunpack.c.h.b16 %v1108
  %v1152 = vunpack.c.l.b16 %v1109
  %v1153 = vunpack.c.h.b16 %v1109
  %v1154 = vunpack.c.l.b16 %v1110
  %v1155 = vunpack.c.h.b16 %v1110
  %v1156 = vunpack.c.l.b16 %v1111
  %v1157 = vunpack.c.h.b16 %v1111
  %v1158 = vunpack.c.l.b16 %v1112
  %v1159 = vunpack.c.h.b16 %v1112
  %v1160 = vunpack.c.l.b16 %v1113
  %v1161 = vunpack.c.h.b16 %v1113
  %v1162 = vpack.c.b16 %v1138, %v1130
  %v1163 = vpack.c.b16 %v1139, %v1131
  %v1164 = vpack.c.b16 %v1140, %v1132
  %v1165 = vpack.c.b16 %v1141, %v1133
  %v1166 = vpack.c.b16 %v1142, %v1134
  %v1167 = vpack.c.b16 %v1143, %v1135
  %v1168 = vpack.c.b16 %v1144, %v1136
  %v1169 = vpack.c.b16 %v1145, %v1137
  %v1170 = vpack.c.b16 %v1154, %v1146
  %v1171 = vpack.c.b16 %v1155, %v1147
  %v1172 = vpack.c.b16 %v1156, %v1148
  %v1173 = vpack.c.b16 %v1157, %v1149
  %v1174 = vpack.c.b16 %v1158, %v1150
  %v1175 = vpack.c.b16 %v1159, %v1151
  %v1176 = vpack.c.b16 %v1160, %v1152
  %v1177 = vpack.c.b16 %v1161, %v1153
  %vm1194 = vcmask 261120
  %v1196 = vsel %vm1194, %v1097, 0
  %1198 = vmatprep.subr.bf16.mxu0 %v1163
  %1199 = vmatpush1.bf16.msra.mxu0 %v1162
  %1200 = vmatprep.subr.bf16.mxu0 %v1171
  %1201 = vmatpush1.bf16.msra.mxu0 %v1170
  %1202 = vmatprep.subr.bf16.mxu0 0
  %1203 = vmatpush1.bf16.msra.mxu0 0
  %1204 = vmatprep.subr.bf16.mxu0 0
  %1205 = vmatpush1.bf16.msra.mxu0 0
  %1206 = vmatprep.subr.bf16.mxu0 0
  %1207 = vmatpush1.bf16.msra.mxu0 0
  %1208 = vmatprep.subr.bf16.mxu0 0
  %1209 = vmatpush1.bf16.msra.mxu0 0
  %1210 = vmatprep.subr.bf16.mxu0 0
  %1211 = vmatpush1.bf16.msra.mxu0 0
  %1212 = vmatprep.subr.bf16.mxu0 0
  %1213 = vmatpush1.bf16.msra.mxu0 0
  %1214 = vmatprep.subr.bf16.mxu0 0
  %1215 = vmatpush1.bf16.msra.mxu0 0
  %1216 = vmatprep.subr.bf16.mxu0 0
  %1217 = vmatpush1.bf16.msra.mxu0 0
  %1218 = vmatprep.subr.bf16.mxu0 0
  %1219 = vmatpush1.bf16.msra.mxu0 0
  %1220 = vmatprep.subr.bf16.mxu0 0
  %1221 = vmatpush1.bf16.msra.mxu0 0
  %1222 = vmatprep.subr.bf16.mxu0 0
  %1223 = vmatpush1.bf16.msra.mxu0 0
  %1224 = vmatprep.subr.bf16.mxu0 0
  %1225 = vmatpush1.bf16.msra.mxu0 0
  %1226 = vmatprep.subr.bf16.mxu0 0
  %1227 = vmatpush1.bf16.msra.mxu0 0
  %1228 = vmatprep.subr.bf16.mxu0 0
  %1229 = vmatpush1.bf16.msra.mxu0 0
  %1230 = vmatprep.mubr.bf16.mxu0 0
  %1231 = vmatmul.mubr.bf16.gmra.mrb[0].mxu0 %v1196
  %v1232 = vpop.f32.mrb[0].mxu0
  %v1233 = vadd.f32 0.0, %v1232
  %v1234 = vpop.f32.mrb[0].mxu0
  %v1235 = vadd.f32 0.0, %v1234
  %v1236 = vpop.f32.mrb[0].mxu0
  %v1237 = vadd.f32 0.0, %v1236
  %v1238 = vpop.f32.mrb[0].mxu0
  %v1239 = vadd.f32 0.0, %v1238
  %1240 = vdwg.mxu0
  %1241 = vmatprep.subr.bf16.mxu0 %v1165
  %1242 = vmatpush1.bf16.msra.mxu0 %v1164
  %1243 = vmatprep.subr.bf16.mxu0 %v1173
  %1244 = vmatpush1.bf16.msra.mxu0 %v1172
  %1245 = vmatprep.subr.bf16.mxu0 0
  %1246 = vmatpush1.bf16.msra.mxu0 0
  %1247 = vmatprep.subr.bf16.mxu0 0
  %1248 = vmatpush1.bf16.msra.mxu0 0
  %1249 = vmatprep.subr.bf16.mxu0 0
  %1250 = vmatpush1.bf16.msra.mxu0 0
  %1251 = vmatprep.subr.bf16.mxu0 0
  %1252 = vmatpush1.bf16.msra.mxu0 0
  %1253 = vmatprep.subr.bf16.mxu0 0
  %1254 = vmatpush1.bf16.msra.mxu0 0
  %1255 = vmatprep.subr.bf16.mxu0 0
  %1256 = vmatpush1.bf16.msra.mxu0 0
  %1257 = vmatprep.subr.bf16.mxu0 0
  %1258 = vmatpush1.bf16.msra.mxu0 0
  %1259 = vmatprep.subr.bf16.mxu0 0
  %1260 = vmatpush1.bf16.msra.mxu0 0
  %1261 = vmatprep.subr.bf16.mxu0 0
  %1262 = vmatpush1.bf16.msra.mxu0 0
  %1263 = vmatprep.subr.bf16.mxu0 0
  %1264 = vmatpush1.bf16.msra.mxu0 0
  %1265 = vmatprep.subr.bf16.mxu0 0
  %1266 = vmatpush1.bf16.msra.mxu0 0
  %1267 = vmatprep.subr.bf16.mxu0 0
  %1268 = vmatpush1.bf16.msra.mxu0 0
  %1269 = vmatprep.subr.bf16.mxu0 0
  %1270 = vmatpush1.bf16.msra.mxu0 0
  %1271 = vmatprep.subr.bf16.mxu0 0
  %1272 = vmatpush1.bf16.msra.mxu0 0
  %1273 = vmatprep.mubr.bf16.mxu0 0
  %1274 = vmatmul.mubr.bf16.gmra.mrb[0].mxu0 %v1196
  %v1275 = vpop.f32.mrb[0].mxu0
  %v1276 = vadd.f32 0.0, %v1275
  %v1277 = vpop.f32.mrb[0].mxu0
  %v1278 = vadd.f32 0.0, %v1277
  %v1279 = vpop.f32.mrb[0].mxu0
  %v1280 = vadd.f32 0.0, %v1279
  %v1281 = vpop.f32.mrb[0].mxu0
  %v1282 = vadd.f32 0.0, %v1281
  %1283 = vdwg.mxu0
  %1284 = vmatprep.subr.bf16.mxu0 %v1167
  %1285 = vmatpush1.bf16.msra.mxu0 %v1166
  %1286 = vmatprep.subr.bf16.mxu0 %v1175
  %1287 = vmatpush1.bf16.msra.mxu0 %v1174
  %1288 = vmatprep.subr.bf16.mxu0 0
  %1289 = vmatpush1.bf16.msra.mxu0 0
  %1290 = vmatprep.subr.bf16.mxu0 0
  %1291 = vmatpush1.bf16.msra.mxu0 0
  %1292 = vmatprep.subr.bf16.mxu0 0
  %1293 = vmatpush1.bf16.msra.mxu0 0
  %1294 = vmatprep.subr.bf16.mxu0 0
  %1295 = vmatpush1.bf16.msra.mxu0 0
  %1296 = vmatprep.subr.bf16.mxu0 0
  %1297 = vmatpush1.bf16.msra.mxu0 0
  %1298 = vmatprep.subr.bf16.mxu0 0
  %1299 = vmatpush1.bf16.msra.mxu0 0
  %1300 = vmatprep.subr.bf16.mxu0 0
  %1301 = vmatpush1.bf16.msra.mxu0 0
  %1302 = vmatprep.subr.bf16.mxu0 0
  %1303 = vmatpush1.bf16.msra.mxu0 0
  %1304 = vmatprep.subr.bf16.mxu0 0
  %1305 = vmatpush1.bf16.msra.mxu0 0
  %1306 = vmatprep.subr.bf16.mxu0 0
  %1307 = vmatpush1.bf16.msra.mxu0 0
  %1308 = vmatprep.subr.bf16.mxu0 0
  %1309 = vmatpush1.bf16.msra.mxu0 0
  %1310 = vmatprep.subr.bf16.mxu0 0
  %1311 = vmatpush1.bf16.msra.mxu0 0
  %1312 = vmatprep.subr.bf16.mxu0 0
  %1313 = vmatpush1.bf16.msra.mxu0 0
  %1314 = vmatprep.subr.bf16.mxu0 0
  %1315 = vmatpush1.bf16.msra.mxu0 0
  %1316 = vmatprep.mubr.bf16.mxu0 0
  %1317 = vmatmul.mubr.bf16.gmra.mrb[0].mxu0 %v1196
  %v1318 = vpop.f32.mrb[0].mxu0
  %v1319 = vadd.f32 0.0, %v1318
  %v1320 = vpop.f32.mrb[0].mxu0
  %v1321 = vadd.f32 0.0, %v1320
  %v1322 = vpop.f32.mrb[0].mxu0
  %v1323 = vadd.f32 0.0, %v1322
  %v1324 = vpop.f32.mrb[0].mxu0
  %v1325 = vadd.f32 0.0, %v1324
  %1326 = vdwg.mxu0
  %1327 = vmatprep.subr.bf16.mxu0 %v1169
  %1328 = vmatpush1.bf16.msra.mxu0 %v1168
  %1329 = vmatprep.subr.bf16.mxu0 %v1177
  %1330 = vmatpush1.bf16.msra.mxu0 %v1176
  %1331 = vmatprep.subr.bf16.mxu0 0
  %1332 = vmatpush1.bf16.msra.mxu0 0
  %1333 = vmatprep.subr.bf16.mxu0 0
  %1334 = vmatpush1.bf16.msra.mxu0 0
  %1335 = vmatprep.subr.bf16.mxu0 0
  %1336 = vmatpush1.bf16.msra.mxu0 0
  %1337 = vmatprep.subr.bf16.mxu0 0
  %1338 = vmatpush1.bf16.msra.mxu0 0
  %1339 = vmatprep.subr.bf16.mxu0 0
  %1340 = vmatpush1.bf16.msra.mxu0 0
  %1341 = vmatprep.subr.bf16.mxu0 0
  %1342 = vmatpush1.bf16.msra.mxu0 0
  %1343 = vmatprep.subr.bf16.mxu0 0
  %1344 = vmatpush1.bf16.msra.mxu0 0
  %1345 = vmatprep.subr.bf16.mxu0 0
  %1346 = vmatpush1.bf16.msra.mxu0 0
  %1347 = vmatprep.subr.bf16.mxu0 0
  %1348 = vmatpush1.bf16.msra.mxu0 0
  %1349 = vmatprep.subr.bf16.mxu0 0
  %1350 = vmatpush1.bf16.msra.mxu0 0
  %1351 = vmatprep.subr.bf16.mxu0 0
  %1352 = vmatpush1.bf16.msra.mxu0 0
  %1353 = vmatprep.subr.bf16.mxu0 0
  %1354 = vmatpush1.bf16.msra.mxu0 0
  %1355 = vmatprep.subr.bf16.mxu0 0
  %1356 = vmatpush1.bf16.msra.mxu0 0
  %1357 = vmatprep.subr.bf16.mxu0 0
  %1358 = vmatpush1.bf16.msra.mxu0 0
  %1359 = vmatprep.mubr.bf16.mxu0 0
  %1360 = vmatmul.mubr.bf16.gmra.mrb[0].mxu0 %v1196
  %v1361 = vpop.f32.mrb[0].mxu0
  %v1362 = vadd.f32 0.0, %v1361
  %v1363 = vpop.f32.mrb[0].mxu0
  %v1364 = vadd.f32 0.0, %v1363
  %v1365 = vpop.f32.mrb[0].mxu0
  %v1366 = vadd.f32 0.0, %v1365
  %v1367 = vpop.f32.mrb[0].mxu0
  %v1368 = vadd.f32 0.0, %v1367
  %1369 = vdwg.mxu0
  %v1370 = vrcp.pop %v1233
  %v1371 = vrcp.pop %v1235
  %v1372 = vrcp.pop %v1276
  %v1373 = vrcp.pop %v1278
  %v1374 = vrcp.pop %v1319
  %v1375 = vrcp.pop %v1321
  %v1376 = vrcp.pop %v1362
  %v1377 = vrcp.pop %v1364
  %v1378 = vrcp.pop %v1237
  %v1379 = vrcp.pop %v1239
  %v1380 = vrcp.pop %v1280
  %v1381 = vrcp.pop %v1282
  %v1382 = vrcp.pop %v1323
  %v1383 = vrcp.pop %v1325
  %v1384 = vrcp.pop %v1366
  %v1385 = vrcp.pop %v1368
  %v1386 = vmul.f32 %v382, %v1370
  %v1387 = vmul.f32 %v384, %v1371
  %v1388 = vmul.f32 %v386, %v1372
  %v1389 = vmul.f32 %v388, %v1373
  %v1390 = vmul.f32 %v390, %v1374
  %v1391 = vmul.f32 %v392, %v1375
  %v1392 = vmul.f32 %v394, %v1376
  %v1393 = vmul.f32 %v396, %v1377
  %v1394 = vmul.f32 %v398, %v1378
  %v1395 = vmul.f32 %v400, %v1379
  %v1396 = vmul.f32 %v402, %v1380
  %v1397 = vmul.f32 %v404, %v1381
  %v1398 = vmul.f32 %v406, %v1382
  %v1399 = vmul.f32 %v408, %v1383
  %v1400 = vmul.f32 %v410, %v1384
  %v1401 = vmul.f32 %v412, %v1385
  %v1402 = vpack.c.bf16 %v1394, %v1386
  %v1403 = vpack.c.bf16 %v1395, %v1387
  %v1404 = vpack.c.bf16 %v1396, %v1388
  %v1405 = vpack.c.bf16 %v1397, %v1389
  %v1406 = vpack.c.bf16 %v1398, %v1390
  %v1407 = vpack.c.bf16 %v1399, %v1391
  %v1408 = vpack.c.bf16 %v1400, %v1392
  %v1409 = vpack.c.bf16 %v1401, %v1393
  %v1410 = vld [vmem:[%s5] sm:$0xf]
  %v1411 = vld [vmem:[%s5 + $0x4] sm:$0xf]
  %v1412 = vld [vmem:[%s5 + $0x8] sm:$0xf]
  %v1413 = vld [vmem:[%s5 + $0xc] sm:$0xf]
  %v1414 = vld [vmem:[%s5 + $0x10] sm:$0xf]
  %v1415 = vld [vmem:[%s5 + $0x14] sm:$0xf]
  %v1416 = vld [vmem:[%s5 + $0x18] sm:$0xf]
  %v1417 = vld [vmem:[%s5 + $0x1c] sm:$0xf]
  %v1418 = vld [vmem:[%s5 + $0x20] sm:$0xf]
  %v1419 = vld [vmem:[%s5 + $0x24] sm:$0xf]
  %v1420 = vld [vmem:[%s5 + $0x28] sm:$0xf]
  %v1421 = vld [vmem:[%s5 + $0x2c] sm:$0xf]
  %v1422 = vld [vmem:[%s5 + $0x30] sm:$0xf]
  %v1423 = vld [vmem:[%s5 + $0x34] sm:$0xf]
  %v1424 = vld [vmem:[%s5 + $0x38] sm:$0xf]
  %v1425 = vld [vmem:[%s5 + $0x3c] sm:$0xf]
  %v1426 = vld [vmem:[%s5 + $0x40] sm:$0xf]
  %v1427 = vld [vmem:[%s5 + $0x44] sm:$0xf]
  %v1428 = vld [vmem:[%s5 + $0x48] sm:$0xf]
  %v1429 = vld [vmem:[%s5 + $0x4c] sm:$0xf]
  %v1430 = vld [vmem:[%s5 + $0x50] sm:$0xf]
  %v1431 = vld [vmem:[%s5 + $0x54] sm:$0xf]
  %v1432 = vld [vmem:[%s5 + $0x58] sm:$0xf]
  %v1433 = vld [vmem:[%s5 + $0x5c] sm:$0xf]
  %v1434 = vld [vmem:[%s5 + $0x60] sm:$0xf]
  %v1435 = vld [vmem:[%s5 + $0x64] sm:$0xf]
  %v1436 = vld [vmem:[%s5 + $0x68] sm:$0xf]
  %v1437 = vld [vmem:[%s5 + $0x6c] sm:$0xf]
  %v1438 = vld [vmem:[%s5 + $0x70] sm:$0xf]
  %v1439 = vld [vmem:[%s5 + $0x74] sm:$0xf]
  %v1440 = vld [vmem:[%s5 + $0x78] sm:$0xf]
  %v1441 = vld [vmem:[%s5 + $0x7c] sm:$0xf]
  %v1442 = vld [vmem:[%s5 + $0x80] sm:$0xf]
  %v1443 = vld [vmem:[%s5 + $0x84] sm:$0xf]
  %v1444 = vld [vmem:[%s5 + $0x88] sm:$0xf]
  %v1445 = vld [vmem:[%s5 + $0x8c] sm:$0xf]
  %v1446 = vld [vmem:[%s5 + $0x90] sm:$0xf]
  %v1447 = vld [vmem:[%s5 + $0x94] sm:$0xf]
  %v1448 = vld [vmem:[%s5 + $0x98] sm:$0xf]
  %v1449 = vld [vmem:[%s5 + $0x9c] sm:$0xf]
  %v1450 = vld [vmem:[%s5 + $0xa0] sm:$0xf]
  %v1451 = vld [vmem:[%s5 + $0xa4] sm:$0xf]
  %v1452 = vld [vmem:[%s5 + $0xa8] sm:$0xf]
  %v1453 = vld [vmem:[%s5 + $0xac] sm:$0xf]
  %v1454 = vld [vmem:[%s5 + $0xb0] sm:$0xf]
  %v1455 = vld [vmem:[%s5 + $0xb4] sm:$0xf]
  %v1456 = vld [vmem:[%s5 + $0xb8] sm:$0xf]
  %v1457 = vld [vmem:[%s5 + $0xbc] sm:$0xf]
  %v1458 = vld [vmem:[%s5 + $0xc0] sm:$0xf]
  %v1459 = vld [vmem:[%s5 + $0xc4] sm:$0xf]
  %v1460 = vld [vmem:[%s5 + $0xc8] sm:$0xf]
  %v1461 = vld [vmem:[%s5 + $0xcc] sm:$0xf]
  %v1462 = vld [vmem:[%s5 + $0xd0] sm:$0xf]
  %v1463 = vld [vmem:[%s5 + $0xd4] sm:$0xf]
  %v1464 = vld [vmem:[%s5 + $0xd8] sm:$0xf]
  %v1465 = vld [vmem:[%s5 + $0xdc] sm:$0xf]
  %v1466 = vld [vmem:[%s5 + $0xe0] sm:$0xf]
  %v1467 = vld [vmem:[%s5 + $0xe4] sm:$0xf]
  %v1468 = vld [vmem:[%s5 + $0xe8] sm:$0xf]
  %v1469 = vld [vmem:[%s5 + $0xec] sm:$0xf]
  %v1470 = vld [vmem:[%s5 + $0xf0] sm:$0xf]
  %v1471 = vld [vmem:[%s5 + $0xf4] sm:$0xf]
  %v1472 = vld [vmem:[%s5 + $0xf8] sm:$0xf]
  %v1473 = vld [vmem:[%s5 + $0xfc] sm:$0xf]
  %v1474 = vld [vmem:[%s5 + $0x100] sm:$0xf]
  %v1475 = vld [vmem:[%s5 + $0x104] sm:$0xf]
  %v1476 = vld [vmem:[%s5 + $0x108] sm:$0xf]
  %v1477 = vld [vmem:[%s5 + $0x10c] sm:$0xf]
  %v1478 = vld [vmem:[%s5 + $0x110] sm:$0xf]
  %v1479 = vld [vmem:[%s5 + $0x114] sm:$0xf]
  %v1480 = vld [vmem:[%s5 + $0x118] sm:$0xf]
  %v1481 = vld [vmem:[%s5 + $0x11c] sm:$0xf]
  %v1482 = vld [vmem:[%s5 + $0x120] sm:$0xf]
  %v1483 = vld [vmem:[%s5 + $0x124] sm:$0xf]
  %v1484 = vld [vmem:[%s5 + $0x128] sm:$0xf]
  %v1485 = vld [vmem:[%s5 + $0x12c] sm:$0xf]
  %v1486 = vld [vmem:[%s5 + $0x130] sm:$0xf]
  %v1487 = vld [vmem:[%s5 + $0x134] sm:$0xf]
  %v1488 = vld [vmem:[%s5 + $0x138] sm:$0xf]
  %v1489 = vld [vmem:[%s5 + $0x13c] sm:$0xf]
  %v1490 = vld [vmem:[%s5 + $0x140] sm:$0xf]
  %v1491 = vld [vmem:[%s5 + $0x144] sm:$0xf]
  %v1492 = vld [vmem:[%s5 + $0x148] sm:$0xf]
  %v1493 = vld [vmem:[%s5 + $0x14c] sm:$0xf]
  %v1494 = vld [vmem:[%s5 + $0x150] sm:$0xf]
  %v1495 = vld [vmem:[%s5 + $0x154] sm:$0xf]
  %v1496 = vld [vmem:[%s5 + $0x158] sm:$0xf]
  %v1497 = vld [vmem:[%s5 + $0x15c] sm:$0xf]
  %v1498 = vld [vmem:[%s5 + $0x160] sm:$0xf]
  %v1499 = vld [vmem:[%s5 + $0x164] sm:$0xf]
  %v1500 = vld [vmem:[%s5 + $0x168] sm:$0xf]
  %v1501 = vld [vmem:[%s5 + $0x16c] sm:$0xf]
  %v1502 = vld [vmem:[%s5 + $0x170] sm:$0xf]
  %v1503 = vld [vmem:[%s5 + $0x174] sm:$0xf]
  %v1504 = vld [vmem:[%s5 + $0x178] sm:$0xf]
  %v1505 = vld [vmem:[%s5 + $0x17c] sm:$0xf]
  %v1506 = vld [vmem:[%s5 + $0x180] sm:$0xf]
  %v1507 = vld [vmem:[%s5 + $0x184] sm:$0xf]
  %v1508 = vld [vmem:[%s5 + $0x188] sm:$0xf]
  %v1509 = vld [vmem:[%s5 + $0x18c] sm:$0xf]
  %v1510 = vld [vmem:[%s5 + $0x190] sm:$0xf]
  %v1511 = vld [vmem:[%s5 + $0x194] sm:$0xf]
  %v1512 = vld [vmem:[%s5 + $0x198] sm:$0xf]
  %v1513 = vld [vmem:[%s5 + $0x19c] sm:$0xf]
  %v1514 = vld [vmem:[%s5 + $0x1a0] sm:$0xf]
  %v1515 = vld [vmem:[%s5 + $0x1a4] sm:$0xf]
  %v1516 = vld [vmem:[%s5 + $0x1a8] sm:$0xf]
  %v1517 = vld [vmem:[%s5 + $0x1ac] sm:$0xf]
  %v1518 = vld [vmem:[%s5 + $0x1b0] sm:$0xf]
  %v1519 = vld [vmem:[%s5 + $0x1b4] sm:$0xf]
  %v1520 = vld [vmem:[%s5 + $0x1b8] sm:$0xf]
  %v1521 = vld [vmem:[%s5 + $0x1bc] sm:$0xf]
  %v1522 = vld [vmem:[%s5 + $0x1c0] sm:$0xf]
  %v1523 = vld [vmem:[%s5 + $0x1c4] sm:$0xf]
  %v1524 = vld [vmem:[%s5 + $0x1c8] sm:$0xf]
  %v1525 = vld [vmem:[%s5 + $0x1cc] sm:$0xf]
  %v1526 = vld [vmem:[%s5 + $0x1d0] sm:$0xf]
  %v1527 = vld [vmem:[%s5 + $0x1d4] sm:$0xf]
  %v1528 = vld [vmem:[%s5 + $0x1d8] sm:$0xf]
  %v1529 = vld [vmem:[%s5 + $0x1dc] sm:$0xf]
  %v1530 = vld [vmem:[%s5 + $0x1e0] sm:$0xf]
  %v1531 = vld [vmem:[%s5 + $0x1e4] sm:$0xf]
  %v1532 = vld [vmem:[%s5 + $0x1e8] sm:$0xf]
  %v1533 = vld [vmem:[%s5 + $0x1ec] sm:$0xf]
  %v1534 = vld [vmem:[%s5 + $0x1f0] sm:$0xf]
  %v1535 = vld [vmem:[%s5 + $0x1f4] sm:$0xf]
  %v1536 = vld [vmem:[%s5 + $0x1f8] sm:$0xf]
  %v1537 = vld [vmem:[%s5 + $0x1fc] sm:$0xf]
  %v1538 = vld [vmem:[%s6] sm:$0x1]
  %v1540 = vlaneseq
  %v1541 = vshrl.u32 %v1540, 7
  %v1542 = vsub.s32 0, %v1541
  %v1543 = vrot.slane %v1538, %v1542
  %v1673 = vunpack.c.l.b16 %v1410
  %v1674 = vunpack.c.l.b16 %v1411
  %v1675 = vunpack.c.l.b16 %v1412
  %v1676 = vunpack.c.l.b16 %v1413
  %v1677 = vunpack.c.l.b16 %v1414
  %v1678 = vunpack.c.l.b16 %v1415
  %v1679 = vunpack.c.l.b16 %v1416
  %v1680 = vunpack.c.l.b16 %v1417
  %v1681 = vunpack.c.l.b16 %v1418
  %v1682 = vunpack.c.l.b16 %v1419
  %v1683 = vunpack.c.l.b16 %v1420
  %v1684 = vunpack.c.l.b16 %v1421
  %v1685 = vunpack.c.l.b16 %v1422
  %v1686 = vunpack.c.l.b16 %v1423
  %v1687 = vunpack.c.l.b16 %v1424
  %v1688 = vunpack.c.l.b16 %v1425
  %v1689 = vunpack.c.l.b16 %v1426
  %v1690 = vunpack.c.l.b16 %v1427
  %v1691 = vunpack.c.l.b16 %v1428
  %v1692 = vunpack.c.l.b16 %v1429
  %v1693 = vunpack.c.l.b16 %v1430
  %v1694 = vunpack.c.l.b16 %v1431
  %v1695 = vunpack.c.l.b16 %v1432
  %v1696 = vunpack.c.l.b16 %v1433
  %v1697 = vunpack.c.l.b16 %v1434
  %v1698 = vunpack.c.l.b16 %v1435
  %v1699 = vunpack.c.l.b16 %v1436
  %v1700 = vunpack.c.l.b16 %v1437
  %v1701 = vunpack.c.l.b16 %v1438
  %v1702 = vunpack.c.l.b16 %v1439
  %v1703 = vunpack.c.l.b16 %v1440
  %v1704 = vunpack.c.l.b16 %v1441
  %v1705 = vunpack.c.l.b16 %v1442
  %v1706 = vunpack.c.l.b16 %v1443
  %v1707 = vunpack.c.l.b16 %v1444
  %v1708 = vunpack.c.l.b16 %v1445
  %v1709 = vunpack.c.l.b16 %v1446
  %v1710 = vunpack.c.l.b16 %v1447
  %v1711 = vunpack.c.l.b16 %v1448
  %v1712 = vunpack.c.l.b16 %v1449
  %v1713 = vunpack.c.l.b16 %v1450
  %v1714 = vunpack.c.l.b16 %v1451
  %v1715 = vunpack.c.l.b16 %v1452
  %v1716 = vunpack.c.l.b16 %v1453
  %v1717 = vunpack.c.l.b16 %v1454
  %v1718 = vunpack.c.l.b16 %v1455
  %v1719 = vunpack.c.l.b16 %v1456
  %v1720 = vunpack.c.l.b16 %v1457
  %v1721 = vunpack.c.l.b16 %v1458
  %v1722 = vunpack.c.l.b16 %v1459
  %v1723 = vunpack.c.l.b16 %v1460
  %v1724 = vunpack.c.l.b16 %v1461
  %v1725 = vunpack.c.l.b16 %v1462
  %v1726 = vunpack.c.l.b16 %v1463
  %v1727 = vunpack.c.l.b16 %v1464
  %v1728 = vunpack.c.l.b16 %v1465
  %v1729 = vunpack.c.l.b16 %v1466
  %v1730 = vunpack.c.l.b16 %v1467
  %v1731 = vunpack.c.l.b16 %v1468
  %v1732 = vunpack.c.l.b16 %v1469
  %v1733 = vunpack.c.l.b16 %v1470
  %v1734 = vunpack.c.l.b16 %v1471
  %v1735 = vunpack.c.l.b16 %v1472
  %v1736 = vunpack.c.l.b16 %v1473
  %v1737 = vunpack.c.l.b16 %v1474
  %v1738 = vunpack.c.l.b16 %v1475
  %v1739 = vunpack.c.l.b16 %v1476
  %v1740 = vunpack.c.l.b16 %v1477
  %v1741 = vunpack.c.l.b16 %v1478
  %v1742 = vunpack.c.l.b16 %v1479
  %v1743 = vunpack.c.l.b16 %v1480
  %v1744 = vunpack.c.l.b16 %v1481
  %v1745 = vunpack.c.l.b16 %v1482
  %v1746 = vunpack.c.l.b16 %v1483
  %v1747 = vunpack.c.l.b16 %v1484
  %v1748 = vunpack.c.l.b16 %v1485
  %v1749 = vunpack.c.l.b16 %v1486
  %v1750 = vunpack.c.l.b16 %v1487
  %v1751 = vunpack.c.l.b16 %v1488
  %v1752 = vunpack.c.l.b16 %v1489
  %v1753 = vunpack.c.l.b16 %v1490
  %v1754 = vunpack.c.l.b16 %v1491
  %v1755 = vunpack.c.l.b16 %v1492
  %v1756 = vunpack.c.l.b16 %v1493
  %v1757 = vunpack.c.l.b16 %v1494
  %v1758 = vunpack.c.l.b16 %v1495
  %v1759 = vunpack.c.l.b16 %v1496
  %v1760 = vunpack.c.l.b16 %v1497
  %v1761 = vunpack.c.l.b16 %v1498
  %v1762 = vunpack.c.l.b16 %v1499
  %v1763 = vunpack.c.l.b16 %v1500
  %v1764 = vunpack.c.l.b16 %v1501
  %v1765 = vunpack.c.l.b16 %v1502
  %v1766 = vunpack.c.l.b16 %v1503
  %v1767 = vunpack.c.l.b16 %v1504
  %v1768 = vunpack.c.l.b16 %v1505
  %v1769 = vunpack.c.l.b16 %v1506
  %v1770 = vunpack.c.l.b16 %v1507
  %v1771 = vunpack.c.l.b16 %v1508
  %v1772 = vunpack.c.l.b16 %v1509
  %v1773 = vunpack.c.l.b16 %v1510
  %v1774 = vunpack.c.l.b16 %v1511
  %v1775 = vunpack.c.l.b16 %v1512
  %v1776 = vunpack.c.l.b16 %v1513
  %v1777 = vunpack.c.l.b16 %v1514
  %v1778 = vunpack.c.l.b16 %v1515
  %v1779 = vunpack.c.l.b16 %v1516
  %v1780 = vunpack.c.l.b16 %v1517
  %v1781 = vunpack.c.l.b16 %v1518
  %v1782 = vunpack.c.l.b16 %v1519
  %v1783 = vunpack.c.l.b16 %v1520
  %v1784 = vunpack.c.l.b16 %v1521
  %v1785 = vunpack.c.l.b16 %v1522
  %v1786 = vunpack.c.l.b16 %v1523
  %v1787 = vunpack.c.l.b16 %v1524
  %v1788 = vunpack.c.l.b16 %v1525
  %v1789 = vunpack.c.l.b16 %v1526
  %v1790 = vunpack.c.l.b16 %v1527
  %v1791 = vunpack.c.l.b16 %v1528
  %v1792 = vunpack.c.l.b16 %v1529
  %v1793 = vunpack.c.l.b16 %v1530
  %v1794 = vunpack.c.l.b16 %v1531
  %v1795 = vunpack.c.l.b16 %v1532
  %v1796 = vunpack.c.l.b16 %v1533
  %v1797 = vunpack.c.l.b16 %v1534
  %v1798 = vunpack.c.l.b16 %v1535
  %v1799 = vunpack.c.l.b16 %v1536
  %v1800 = vunpack.c.l.b16 %v1537
  %v1801 = vpack.c.b16 %v1674, %v1673
  %v1802 = vpack.c.b16 %v1676, %v1675
  %v1803 = vpack.c.b16 %v1678, %v1677
  %v1804 = vpack.c.b16 %v1680, %v1679
  %v1805 = vpack.c.b16 %v1682, %v1681
  %v1806 = vpack.c.b16 %v1684, %v1683
  %v1807 = vpack.c.b16 %v1686, %v1685
  %v1808 = vpack.c.b16 %v1688, %v1687
  %v1809 = vpack.c.b16 %v1690, %v1689
  %v1810 = vpack.c.b16 %v1692, %v1691
  %v1811 = vpack.c.b16 %v1694, %v1693
  %v1812 = vpack.c.b16 %v1696, %v1695
  %v1813 = vpack.c.b16 %v1698, %v1697
  %v1814 = vpack.c.b16 %v1700, %v1699
  %v1815 = vpack.c.b16 %v1702, %v1701
  %v1816 = vpack.c.b16 %v1704, %v1703
  %v1817 = vpack.c.b16 %v1706, %v1705
  %v1818 = vpack.c.b16 %v1708, %v1707
  %v1819 = vpack.c.b16 %v1710, %v1709
  %v1820 = vpack.c.b16 %v1712, %v1711
  %v1821 = vpack.c.b16 %v1714, %v1713
  %v1822 = vpack.c.b16 %v1716, %v1715
  %v1823 = vpack.c.b16 %v1718, %v1717
  %v1824 = vpack.c.b16 %v1720, %v1719
  %v1825 = vpack.c.b16 %v1722, %v1721
  %v1826 = vpack.c.b16 %v1724, %v1723
  %v1827 = vpack.c.b16 %v1726, %v1725
  %v1828 = vpack.c.b16 %v1728, %v1727
  %v1829 = vpack.c.b16 %v1730, %v1729
  %v1830 = vpack.c.b16 %v1732, %v1731
  %v1831 = vpack.c.b16 %v1734, %v1733
  %v1832 = vpack.c.b16 %v1736, %v1735
  %v1833 = vpack.c.b16 %v1738, %v1737
  %v1834 = vpack.c.b16 %v1740, %v1739
  %v1835 = vpack.c.b16 %v1742, %v1741
  %v1836 = vpack.c.b16 %v1744, %v1743
  %v1837 = vpack.c.b16 %v1746, %v1745
  %v1838 = vpack.c.b16 %v1748, %v1747
  %v1839 = vpack.c.b16 %v1750, %v1749
  %v1840 = vpack.c.b16 %v1752, %v1751
  %v1841 = vpack.c.b16 %v1754, %v1753
  %v1842 = vpack.c.b16 %v1756, %v1755
  %v1843 = vpack.c.b16 %v1758, %v1757
  %v1844 = vpack.c.b16 %v1760, %v1759
  %v1845 = vpack.c.b16 %v1762, %v1761
  %v1846 = vpack.c.b16 %v1764, %v1763
  %v1847 = vpack.c.b16 %v1766, %v1765
  %v1848 = vpack.c.b16 %v1768, %v1767
  %v1849 = vpack.c.b16 %v1770, %v1769
  %v1850 = vpack.c.b16 %v1772, %v1771
  %v1851 = vpack.c.b16 %v1774, %v1773
  %v1852 = vpack.c.b16 %v1776, %v1775
  %v1853 = vpack.c.b16 %v1778, %v1777
  %v1854 = vpack.c.b16 %v1780, %v1779
  %v1855 = vpack.c.b16 %v1782, %v1781
  %v1856 = vpack.c.b16 %v1784, %v1783
  %v1857 = vpack.c.b16 %v1786, %v1785
  %v1858 = vpack.c.b16 %v1788, %v1787
  %v1859 = vpack.c.b16 %v1790, %v1789
  %v1860 = vpack.c.b16 %v1792, %v1791
  %v1861 = vpack.c.b16 %v1794, %v1793
  %v1862 = vpack.c.b16 %v1796, %v1795
  %v1863 = vpack.c.b16 %v1798, %v1797
  %v1864 = vpack.c.b16 %v1800, %v1799
  %1929 = vmatprep.subr.bf16.mxu0 0
  %1930 = vmatpush1.bf16.msra.mxu0 %v1801
  %1931 = vmatprep.subr.bf16.mxu0 0
  %1932 = vmatpush1.bf16.msra.mxu0 %v1802
  %1933 = vmatprep.subr.bf16.mxu0 0
  %1934 = vmatpush1.bf16.msra.mxu0 %v1803
  %1935 = vmatprep.subr.bf16.mxu0 0
  %1936 = vmatpush1.bf16.msra.mxu0 %v1804
  %1937 = vmatprep.subr.bf16.mxu0 0
  %1938 = vmatpush1.bf16.msra.mxu0 %v1805
  %1939 = vmatprep.subr.bf16.mxu0 0
  %1940 = vmatpush1.bf16.msra.mxu0 %v1806
  %1941 = vmatprep.subr.bf16.mxu0 0
  %1942 = vmatpush1.bf16.msra.mxu0 %v1807
  %1943 = vmatprep.subr.bf16.mxu0 0
  %1944 = vmatpush1.bf16.msra.mxu0 %v1808
  %1945 = vmatprep.subr.bf16.mxu0 0
  %1946 = vmatpush1.bf16.msra.mxu0 %v1809
  %1947 = vmatprep.subr.bf16.mxu0 0
  %1948 = vmatpush1.bf16.msra.mxu0 %v1810
  %1949 = vmatprep.subr.bf16.mxu0 0
  %1950 = vmatpush1.bf16.msra.mxu0 %v1811
  %1951 = vmatprep.subr.bf16.mxu0 0
  %1952 = vmatpush1.bf16.msra.mxu0 %v1812
  %1953 = vmatprep.subr.bf16.mxu0 0
  %1954 = vmatpush1.bf16.msra.mxu0 %v1813
  %1955 = vmatprep.subr.bf16.mxu0 0
  %1956 = vmatpush1.bf16.msra.mxu0 %v1814
  %1957 = vmatprep.subr.bf16.mxu0 0
  %1958 = vmatpush1.bf16.msra.mxu0 %v1815
  %1959 = vmatprep.subr.bf16.mxu0 0
  %1960 = vmatpush1.bf16.msra.mxu0 %v1816
  %1961 = vmatprep.mubr.bf16.mxu0 %v1403
  %1962 = vmatmul.mubr.bf16.gmra.mrb[0].mxu0 %v1402
  %v1963 = vpop.f32.mrb[0].mxu0
  %v1964 = vadd.f32 %v1543, %v1963
  %v1965 = vpop.f32.mrb[0].mxu0
  %v1966 = vpop.f32.mrb[0].mxu0
  %v1967 = vadd.f32 %v1543, %v1966
  %v1968 = vpop.f32.mrb[0].mxu0
  %1969 = vdwg.mxu0
  %1970 = vmatprep.subr.bf16.mxu0 0
  %1971 = vmatpush1.bf16.msra.mxu0 %v1817
  %1972 = vmatprep.subr.bf16.mxu0 0
  %1973 = vmatpush1.bf16.msra.mxu0 %v1818
  %1974 = vmatprep.subr.bf16.mxu0 0
  %1975 = vmatpush1.bf16.msra.mxu0 %v1819
  %1976 = vmatprep.subr.bf16.mxu0 0
  %1977 = vmatpush1.bf16.msra.mxu0 %v1820
  %1978 = vmatprep.subr.bf16.mxu0 0
  %1979 = vmatpush1.bf16.msra.mxu0 %v1821
  %1980 = vmatprep.subr.bf16.mxu0 0
  %1981 = vmatpush1.bf16.msra.mxu0 %v1822
  %1982 = vmatprep.subr.bf16.mxu0 0
  %1983 = vmatpush1.bf16.msra.mxu0 %v1823
  %1984 = vmatprep.subr.bf16.mxu0 0
  %1985 = vmatpush1.bf16.msra.mxu0 %v1824
  %1986 = vmatprep.subr.bf16.mxu0 0
  %1987 = vmatpush1.bf16.msra.mxu0 %v1825
  %1988 = vmatprep.subr.bf16.mxu0 0
  %1989 = vmatpush1.bf16.msra.mxu0 %v1826
  %1990 = vmatprep.subr.bf16.mxu0 0
  %1991 = vmatpush1.bf16.msra.mxu0 %v1827
  %1992 = vmatprep.subr.bf16.mxu0 0
  %1993 = vmatpush1.bf16.msra.mxu0 %v1828
  %1994 = vmatprep.subr.bf16.mxu0 0
  %1995 = vmatpush1.bf16.msra.mxu0 %v1829
  %1996 = vmatprep.subr.bf16.mxu0 0
  %1997 = vmatpush1.bf16.msra.mxu0 %v1830
  %1998 = vmatprep.subr.bf16.mxu0 0
  %1999 = vmatpush1.bf16.msra.mxu0 %v1831
  %2000 = vmatprep.subr.bf16.mxu0 0
  %2001 = vmatpush1.bf16.msra.mxu0 %v1832
  %2002 = vmatprep.mubr.bf16.mxu0 %v1405
  %2003 = vmatmul.mubr.bf16.gmra.mrb[0].mxu0 %v1404
  %v2004 = vpop.f32.mrb[0].mxu0
  %v2005 = vadd.f32 %v1964, %v2004
  %v2006 = vpop.f32.mrb[0].mxu0
  %v2007 = vpop.f32.mrb[0].mxu0
  %v2008 = vadd.f32 %v1967, %v2007
  %v2009 = vpop.f32.mrb[0].mxu0
  %2010 = vdwg.mxu0
  %2011 = vmatprep.subr.bf16.mxu0 0
  %2012 = vmatpush1.bf16.msra.mxu0 %v1833
  %2013 = vmatprep.subr.bf16.mxu0 0
  %2014 = vmatpush1.bf16.msra.mxu0 %v1834
  %2015 = vmatprep.subr.bf16.mxu0 0
  %2016 = vmatpush1.bf16.msra.mxu0 %v1835
  %2017 = vmatprep.subr.bf16.mxu0 0
  %2018 = vmatpush1.bf16.msra.mxu0 %v1836
  %2019 = vmatprep.subr.bf16.mxu0 0
  %2020 = vmatpush1.bf16.msra.mxu0 %v1837
  %2021 = vmatprep.subr.bf16.mxu0 0
  %2022 = vmatpush1.bf16.msra.mxu0 %v1838
  %2023 = vmatprep.subr.bf16.mxu0 0
  %2024 = vmatpush1.bf16.msra.mxu0 %v1839
  %2025 = vmatprep.subr.bf16.mxu0 0
  %2026 = vmatpush1.bf16.msra.mxu0 %v1840
  %2027 = vmatprep.subr.bf16.mxu0 0
  %2028 = vmatpush1.bf16.msra.mxu0 %v1841
  %2029 = vmatprep.subr.bf16.mxu0 0
  %2030 = vmatpush1.bf16.msra.mxu0 %v1842
  %2031 = vmatprep.subr.bf16.mxu0 0
  %2032 = vmatpush1.bf16.msra.mxu0 %v1843
  %2033 = vmatprep.subr.bf16.mxu0 0
  %2034 = vmatpush1.bf16.msra.mxu0 %v1844
  %2035 = vmatprep.subr.bf16.mxu0 0
  %2036 = vmatpush1.bf16.msra.mxu0 %v1845
  %2037 = vmatprep.subr.bf16.mxu0 0
  %2038 = vmatpush1.bf16.msra.mxu0 %v1846
  %2039 = vmatprep.subr.bf16.mxu0 0
  %2040 = vmatpush1.bf16.msra.mxu0 %v1847
  %2041 = vmatprep.subr.bf16.mxu0 0
  %2042 = vmatpush1.bf16.msra.mxu0 %v1848
  %2043 = vmatprep.mubr.bf16.mxu0 %v1407
  %2044 = vmatmul.mubr.bf16.gmra.mrb[0].mxu0 %v1406
  %v2045 = vpop.f32.mrb[0].mxu0
  %v2046 = vadd.f32 %v2005, %v2045
  %v2047 = vpop.f32.mrb[0].mxu0
  %v2048 = vpop.f32.mrb[0].mxu0
  %v2049 = vadd.f32 %v2008, %v2048
  %v2050 = vpop.f32.mrb[0].mxu0
  %2051 = vdwg.mxu0
  %2052 = vmatprep.subr.bf16.mxu0 0
  %2053 = vmatpush1.bf16.msra.mxu0 %v1849
  %2054 = vmatprep.subr.bf16.mxu0 0
  %2055 = vmatpush1.bf16.msra.mxu0 %v1850
  %2056 = vmatprep.subr.bf16.mxu0 0
  %2057 = vmatpush1.bf16.msra.mxu0 %v1851
  %2058 = vmatprep.subr.bf16.mxu0 0
  %2059 = vmatpush1.bf16.msra.mxu0 %v1852
  %2060 = vmatprep.subr.bf16.mxu0 0
  %2061 = vmatpush1.bf16.msra.mxu0 %v1853
  %2062 = vmatprep.subr.bf16.mxu0 0
  %2063 = vmatpush1.bf16.msra.mxu0 %v1854
  %2064 = vmatprep.subr.bf16.mxu0 0
  %2065 = vmatpush1.bf16.msra.mxu0 %v1855
  %2066 = vmatprep.subr.bf16.mxu0 0
  %2067 = vmatpush1.bf16.msra.mxu0 %v1856
  %2068 = vmatprep.subr.bf16.mxu0 0
  %2069 = vmatpush1.bf16.msra.mxu0 %v1857
  %2070 = vmatprep.subr.bf16.mxu0 0
  %2071 = vmatpush1.bf16.msra.mxu0 %v1858
  %2072 = vmatprep.subr.bf16.mxu0 0
  %2073 = vmatpush1.bf16.msra.mxu0 %v1859
  %2074 = vmatprep.subr.bf16.mxu0 0
  %2075 = vmatpush1.bf16.msra.mxu0 %v1860
  %2076 = vmatprep.subr.bf16.mxu0 0
  %2077 = vmatpush1.bf16.msra.mxu0 %v1861
  %2078 = vmatprep.subr.bf16.mxu0 0
  %2079 = vmatpush1.bf16.msra.mxu0 %v1862
  %2080 = vmatprep.subr.bf16.mxu0 0
  %2081 = vmatpush1.bf16.msra.mxu0 %v1863
  %2082 = vmatprep.subr.bf16.mxu0 0
  %2083 = vmatpush1.bf16.msra.mxu0 %v1864
  %2084 = vmatprep.mubr.bf16.mxu0 %v1409
  %2085 = vmatmul.mubr.bf16.gmra.mrb[0].mxu0 %v1408
  %v2086 = vpop.f32.mrb[0].mxu0
  %v2087 = vadd.f32 %v2046, %v2086
  %v2088 = vpop.f32.mrb[0].mxu0
  %v2089 = vpop.f32.mrb[0].mxu0
  %v2090 = vadd.f32 %v2049, %v2089
  %v2091 = vpop.f32.mrb[0].mxu0
  %2092 = vdwg.mxu0
  %v2093 = vmul.f32 %v2087, %v60
  %v2094 = vmul.f32 %v2090, %v67
  %v2095 = vadd.f32 %v2093, %v38
  %v2096 = vadd.f32 %v2094, %v39
  %vm2097 = vcmask 31744
  %2098 = vst.msk [vmem:[%s7] sm:$0xff] %vm2097, %v2095
  %vm2099 = vcmask 29696
  %2100 = vst.msk [vmem:[%s7 + $0x8] sm:$0x3f] %vm2099, %v2096
  // Predicated region
  $region30: #{timellm_forward.1} parent=0 // pred_check
    _
  $region31: #{timellm_forward.1} parent=0 // pred_check_branch
    %2102 = sbr.rel (0) target = $region33
  $region32: #{timellm_forward.1} parent=0 // pred_region
    _
  $region33: #{timellm_forward.1} parent=0 // pred_fallthru
    _
  // Predicated region
  $region34: #{timellm_forward.1} parent=0 // pred_check
    _
  $region35: #{timellm_forward.1} parent=0 // pred_check_branch
    %2104 = sbr.rel (0) target = $region37
  $region36: #{timellm_forward.1} parent=0 // pred_region
    _
  $region37: #{timellm_forward.1} parent=0 // pred_fallthru
    _

</llo_original>
